<compile_context>
chip_gen: v5e
topology: v5e:2x2
jax: 0.10.0
libtpu: 0.0.40
codegen_flags: <defaults>
</compile_context>

<pallas_src>
import numpy as np
import jax
import jax.numpy as jnp
from jax import lax
from jax.experimental import pallas as pl
from jax.experimental.pallas import tpu as pltpu


def _aux_kernel(xp_ref, wconv_ref, shift_ref, wclsT_ref, bcls_ref,
                ah_ref, awT_ref, out_ref, t_ref):
    # xp_ref   : (H+2, W+2, Cin) f32   zero-padded NHWC input, one batch element
    # wconv_ref: (9, Cin, Cmid)  bf16  3x3 conv weights (BN scale folded in)
    # shift_ref: (1, Cmid)       f32   folded BN shift
    # wclsT_ref: (NC, Cmid)      bf16  1x1 classification conv weights
    # bcls_ref : (NC, 1)         f32   classification bias
    # ah_ref   : (Hout, H)       f32   bilinear weights (align_corners=True), H axis
    # awT_ref  : (W, Wout)       f32   bilinear weights, W axis (transposed)
    # out_ref  : (NC, Hout, Wout) f32  output block, NCHW layout
    # t_ref    : (H*NC, Wout)    f32   scratch: W-upsampled logits, row = y*NC + c
    Hp, Wp, Cin = xp_ref.shape
    H, W = Hp - 2, Wp - 2
    NC, Hout, Wout = out_ref.shape
    Cmid = wconv_ref.shape[2]
    HW = H * W

    # ---- 3x3 conv (stride 1, pad 1) via in-kernel im2col: 9 shifted-window
    # matmuls, bf16 on the MXU, f32 accumulation.
    acc = jnp.zeros((HW, Cmid), jnp.float32)
    for dy in range(3):
        for dx in range(3):
            patch = xp_ref[dy:dy + H, dx:dx + W, :]              # (H, W, Cin)
            p2 = patch.reshape(HW, Cin).astype(jnp.bfloat16)
            acc = acc + jnp.dot(p2, wconv_ref[3 * dy + dx],
                                preferred_element_type=jnp.float32)

    # ---- BatchNorm shift (scale already folded into wconv) + ReLU.
    # Dropout2d(p=0.1) is the identity in eval mode.
    act = jnp.maximum(acc + shift_ref[...], 0.0).astype(jnp.bfloat16)   # (HW, Cmid)

    # ---- 1x1 classification conv, channels-first output: (NC, H*W)
    logits = lax.dot_general(
        wclsT_ref[...], act,
        dimension_numbers=(((1,), (1,)), ((), ())),
        preferred_element_type=jnp.float32) + bcls_ref[...]

    # ---- separable bilinear upsample (align_corners=True):
    # (a) W-direction, fused with the channels-first repack: for each input
    #     row y, (NC, W) @ (W, Wout) -> rows [y*NC, (y+1)*NC) of the scratch.
    awT = awT_ref[...]
    for y in range(H):
        t_ref[y * NC:(y + 1) * NC, :] = jnp.dot(
            logits[:, y * W:(y + 1) * W], awT,
            preferred_element_type=jnp.float32)
    # (b) H-direction: one small matmul per class, written straight into the
    #     NCHW output block.
    ah = ah_ref[...]
    for c in range(NC):
        plane = t_ref[pl.ds(c, H, stride=NC), :]                 # (H, Wout)
        out_ref[c] = jnp.dot(ah, plane, preferred_element_type=jnp.float32)


def _bilinear_matrix(out_size, in_size):
    """(out_size, in_size) PyTorch bilinear weights, align_corners=True."""
    if out_size == 1:
        src = np.zeros((1,), np.float64)
    else:
        src = np.arange(out_size, dtype=np.float64) * (in_size - 1) / (out_size - 1)
    lo = np.clip(np.floor(src).astype(np.int64), 0, in_size - 1)
    hi = np.minimum(lo + 1, in_size - 1)
    frac = (src - lo).astype(np.float32)
    A = np.zeros((out_size, in_size), np.float32)
    A[np.arange(out_size), lo] += (1.0 - frac)
    A[np.arange(out_size), hi] += frac
    return A


def auxiliary_ps_players(x_nchw, params, height, width):
    """AuxiliaryPSPlayers forward (eval mode): (N, Cin, H, W) -> (N, NC, height, width)."""
    (conv_w, gamma, beta, run_mean, run_var, eps, cls_w, cls_b) = params
    N, Cin, H, W = x_nchw.shape
    Cmid = conv_w.shape[0]          # 256
    NC = cls_w.shape[0]             # n_classes
    Hp, Wp = H + 2, W + 2

    # zero-padded NHWC input for the 3x3 / pad=1 conv
    x_nhwc = jnp.transpose(x_nchw, (0, 2, 3, 1)).astype(jnp.float32)
    xp = jnp.pad(x_nhwc, ((0, 0), (1, 1), (1, 1), (0, 0)))       # (N, Hp, Wp, Cin)

    # fold eval-mode BatchNorm into the conv weights (scale) + additive shift
    scale = gamma / jnp.sqrt(run_var + eps)                      # (Cmid,)
    shift = (beta - run_mean * scale).reshape(1, Cmid).astype(jnp.float32)
    # wconv[3*dy+dx, ci, m] = conv_w[m, ci, dy, dx] * scale[m]
    wconv = jnp.transpose(conv_w, (2, 3, 1, 0)).reshape(9, Cin, Cmid)
    wconv = (wconv * scale[None, None, :]).astype(jnp.bfloat16)
    wclsT = cls_w[:, :, 0, 0].astype(jnp.bfloat16)               # (NC, Cmid)
    bcls = cls_b.reshape(NC, 1).astype(jnp.float32)

    # separable bilinear (align_corners=True) matrices -- tiny constants
    ah = jnp.asarray(_bilinear_matrix(height, H))                # (Hout, H)
    awT = jnp.asarray(_bilinear_matrix(width, W).T)              # (W, Wout)

    out = pl.pallas_call(
        _aux_kernel,
        out_shape=jax.ShapeDtypeStruct((N, NC, height, width), jnp.float32),
        grid=(N,),
        in_specs=[
            pl.BlockSpec((None, Hp, Wp, Cin), lambda n: (n, 0, 0, 0)),
            pl.BlockSpec((9, Cin, Cmid), lambda n: (0, 0, 0)),
            pl.BlockSpec((1, Cmid), lambda n: (0, 0)),
            pl.BlockSpec((NC, Cmid), lambda n: (0, 0)),
            pl.BlockSpec((NC, 1), lambda n: (0, 0)),
            pl.BlockSpec((height, H), lambda n: (0, 0)),
            pl.BlockSpec((W, width), lambda n: (0, 0)),
        ],
        out_specs=pl.BlockSpec((None, NC, height, width), lambda n: (n, 0, 0, 0)),
        scratch_shapes=[pltpu.VMEM((H * NC, width), jnp.float32)],
        compiler_params=pltpu.CompilerParams(
            dimension_semantics=("parallel",)),
    )(xp, wconv, shift, wclsT, bcls, ah, awT)
    return out                                                    # already NCHW


def _reference(x_nchw, params, height, width):
    """Pure-JAX reference (same eval-mode semantics), for a sanity check."""
    (conv_w, gamma, beta, run_mean, run_var, eps, cls_w, cls_b) = params
    conv = jax.lax.conv_general_dilated(
        x_nchw, conv_w, window_strides=(1, 1), padding=((1, 1), (1, 1)),
        dimension_numbers=('NCHW', 'OIHW', 'NCHW'))
    bn = ((conv - run_mean[None, :, None, None])
          / jnp.sqrt(run_var + eps)[None, :, None, None]
          * gamma[None, :, None, None] + beta[None, :, None, None])
    act = jnp.maximum(bn, 0.0)
    cls = jax.lax.conv_general_dilated(
        act, cls_w, window_strides=(1, 1), padding=((0, 0), (0, 0)),
        dimension_numbers=('NCHW', 'OIHW', 'NCHW')) + cls_b[None, :, None, None]
    Ah = jnp.asarray(_bilinear_matrix(height, cls.shape[2]))
    Aw = jnp.asarray(_bilinear_matrix(width, cls.shape[3]))
    return jnp.einsum('oh,pw,nchw->ncop', Ah, Aw, cls)


if __name__ == "__main__":
    # Small shapes consistent with the module.
    N, Cin, H, W = 2, 4, 8, 8          # input feature map
    height, width = 16, 16             # upsample target
    n_classes = 8
    Cmid = 256

    key = jax.random.PRNGKey(0)
    ks = jax.random.split(key, 8)
    x = jax.random.normal(ks[0], (N, Cin, H, W), jnp.float32)

    conv_w = jax.random.normal(ks[1], (Cmid, Cin, 3, 3), jnp.float32) * 0.1
    gamma = 1.0 + 0.1 * jax.random.normal(ks[2], (Cmid,), jnp.float32)
    beta = 0.1 * jax.random.normal(ks[3], (Cmid,), jnp.float32)
    run_mean = 0.05 * jax.random.normal(ks[4], (Cmid,), jnp.float32)
    run_var = 1.0 + 0.1 * jnp.abs(jax.random.normal(ks[5], (Cmid,), jnp.float32))
    eps = jnp.float32(1e-5)
    cls_w = jax.random.normal(ks[6], (n_classes, Cmid, 1, 1), jnp.float32) * 0.05
    cls_b = 0.05 * jax.random.normal(ks[7], (n_classes,), jnp.float32)

    params = (conv_w, gamma, beta, run_mean, run_var, eps, cls_w, cls_b)

    out = auxiliary_ps_players(x, params, height, width)
    out = jax.block_until_ready(out)
    assert out.shape == (N, n_classes, height, width), out.shape

    ref = jax.block_until_ready(_reference(x, params, height, width))
    # bf16 matmul operands (f32 accumulation) -> slightly looser tolerance.
    np.testing.assert_allclose(np.asarray(out), np.asarray(ref),
                               rtol=2e-2, atol=2e-2)

    print("KERNEL_OK")
</pallas_src>

<mosaic_0001>
module attributes {stable_mosaic.version = 11 : i64} {
  func.func @_aux_kernel(%arg0: i32, %arg1: memref<1x10x10x4xf32, #tpu.memory_space<vmem>>, %arg2: memref<9x4x256xbf16, #tpu.memory_space<vmem>>, %arg3: memref<1x256xf32, #tpu.memory_space<vmem>>, %arg4: memref<8x256xbf16, #tpu.memory_space<vmem>>, %arg5: memref<8x1xf32, #tpu.memory_space<vmem>>, %arg6: memref<16x8xf32, #tpu.memory_space<vmem>>, %arg7: memref<8x16xf32, #tpu.memory_space<vmem>>, %arg8: memref<1x8x16x16xf32, #tpu.memory_space<vmem>>, %arg9: memref<64x16xf32, #tpu.memory_space<vmem>>) attributes {dimension_semantics = [#tpu.dimension_semantics<parallel>], iteration_bounds = array<i64: 2>, scalar_prefetch = 0 : i64, scratch_operands = 1 : i64, tpu.core_type = #tpu.core_type<tc>, window_params = [{transform_indices = @transform_0, window_bounds = array<i64: 1, 10, 10, 4>}, {pipeline_mode = #tpu.pipeline_mode<synchronous>, transform_indices = @transform_1, window_bounds = array<i64: 9, 4, 256>}, {pipeline_mode = #tpu.pipeline_mode<synchronous>, transform_indices = @transform_2, window_bounds = array<i64: 1, 256>}, {pipeline_mode = #tpu.pipeline_mode<synchronous>, transform_indices = @transform_3, window_bounds = array<i64: 8, 256>}, {pipeline_mode = #tpu.pipeline_mode<synchronous>, transform_indices = @transform_4, window_bounds = array<i64: 8, 1>}, {pipeline_mode = #tpu.pipeline_mode<synchronous>, transform_indices = @transform_5, window_bounds = array<i64: 16, 8>}, {pipeline_mode = #tpu.pipeline_mode<synchronous>, transform_indices = @transform_6, window_bounds = array<i64: 8, 16>}, {transform_indices = @transform_7, window_bounds = array<i64: 1, 8, 16, 16>}]} {
    %cst = arith.constant 0.000000e+00 : f32
    %0 = vector.broadcast %cst : f32 to vector<64x256xf32>
    %c0 = arith.constant 0 : index
    %c0_0 = arith.constant 0 : index
    %c0_1 = arith.constant 0 : index
    %c0_2 = arith.constant 0 : index
    %1 = vector.load %arg1[%c0, %c0_0, %c0_1, %c0_2] : memref<1x10x10x4xf32, #tpu.memory_space<vmem>>, vector<1x8x8x4xf32>
    %2 = vector.shape_cast %1 : vector<1x8x8x4xf32> to vector<8x8x4xf32>
    %3 = vector.shape_cast %2 : vector<8x8x4xf32> to vector<64x4xf32>
    %4 = arith.truncf %3 : vector<64x4xf32> to vector<64x4xbf16>
    %c0_3 = arith.constant 0 : index
    %c0_4 = arith.constant 0 : index
    %c0_5 = arith.constant 0 : index
    %5 = vector.load %arg2[%c0_3, %c0_4, %c0_5] : memref<9x4x256xbf16, #tpu.memory_space<vmem>>, vector<1x4x256xbf16>
    %6 = vector.shape_cast %5 : vector<1x4x256xbf16> to vector<4x256xbf16>
    %cst_6 = arith.constant dense<0.000000e+00> : vector<64x256xf32>
    %7 = tpu.matmul %4, %6, %cst_6 {dimension_numbers = #tpu.dot_dimension_numbers<[1], [0], [0], [1], [0, 0, 1, 1], [], []>} : vector<64x4xbf16>, vector<4x256xbf16>, vector<64x256xf32> -> vector<64x256xf32>
    %8 = arith.addf %0, %7 : vector<64x256xf32>
    %c0_7 = arith.constant 0 : index
    %c0_8 = arith.constant 0 : index
    %c1 = arith.constant 1 : index
    %c0_9 = arith.constant 0 : index
    %9 = vector.load %arg1[%c0_7, %c0_8, %c1, %c0_9] : memref<1x10x10x4xf32, #tpu.memory_space<vmem>>, vector<1x8x8x4xf32>
    %10 = vector.shape_cast %9 : vector<1x8x8x4xf32> to vector<8x8x4xf32>
    %11 = vector.shape_cast %10 : vector<8x8x4xf32> to vector<64x4xf32>
    %12 = arith.truncf %11 : vector<64x4xf32> to vector<64x4xbf16>
    %c1_10 = arith.constant 1 : index
    %c0_11 = arith.constant 0 : index
    %c0_12 = arith.constant 0 : index
    %13 = vector.load %arg2[%c1_10, %c0_11, %c0_12] : memref<9x4x256xbf16, #tpu.memory_space<vmem>>, vector<1x4x256xbf16>
    %14 = vector.shape_cast %13 : vector<1x4x256xbf16> to vector<4x256xbf16>
    %cst_13 = arith.constant dense<0.000000e+00> : vector<64x256xf32>
    %15 = tpu.matmul %12, %14, %cst_13 {dimension_numbers = #tpu.dot_dimension_numbers<[1], [0], [0], [1], [0, 0, 1, 1], [], []>} : vector<64x4xbf16>, vector<4x256xbf16>, vector<64x256xf32> -> vector<64x256xf32>
    %16 = arith.addf %8, %15 : vector<64x256xf32>
    %c0_14 = arith.constant 0 : index
    %c0_15 = arith.constant 0 : index
    %c2 = arith.constant 2 : index
    %c0_16 = arith.constant 0 : index
    %17 = vector.load %arg1[%c0_14, %c0_15, %c2, %c0_16] : memref<1x10x10x4xf32, #tpu.memory_space<vmem>>, vector<1x8x8x4xf32>
    %18 = vector.shape_cast %17 : vector<1x8x8x4xf32> to vector<8x8x4xf32>
    %19 = vector.shape_cast %18 : vector<8x8x4xf32> to vector<64x4xf32>
    %20 = arith.truncf %19 : vector<64x4xf32> to vector<64x4xbf16>
    %c2_17 = arith.constant 2 : index
    %c0_18 = arith.constant 0 : index
    %c0_19 = arith.constant 0 : index
    %21 = vector.load %arg2[%c2_17, %c0_18, %c0_19] : memref<9x4x256xbf16, #tpu.memory_space<vmem>>, vector<1x4x256xbf16>
    %22 = vector.shape_cast %21 : vector<1x4x256xbf16> to vector<4x256xbf16>
    %cst_20 = arith.constant dense<0.000000e+00> : vector<64x256xf32>
    %23 = tpu.matmul %20, %22, %cst_20 {dimension_numbers = #tpu.dot_dimension_numbers<[1], [0], [0], [1], [0, 0, 1, 1], [], []>} : vector<64x4xbf16>, vector<4x256xbf16>, vector<64x256xf32> -> vector<64x256xf32>
    %24 = arith.addf %16, %23 : vector<64x256xf32>
    %c0_21 = arith.constant 0 : index
    %c1_22 = arith.constant 1 : index
    %c0_23 = arith.constant 0 : index
    %c0_24 = arith.constant 0 : index
    %25 = vector.load %arg1[%c0_21, %c1_22, %c0_23, %c0_24] : memref<1x10x10x4xf32, #tpu.memory_space<vmem>>, vector<1x8x8x4xf32>
    %26 = vector.shape_cast %25 : vector<1x8x8x4xf32> to vector<8x8x4xf32>
    %27 = vector.shape_cast %26 : vector<8x8x4xf32> to vector<64x4xf32>
    %28 = arith.truncf %27 : vector<64x4xf32> to vector<64x4xbf16>
    %c3 = arith.constant 3 : index
    %c0_25 = arith.constant 0 : index
    %c0_26 = arith.constant 0 : index
    %29 = vector.load %arg2[%c3, %c0_25, %c0_26] : memref<9x4x256xbf16, #tpu.memory_space<vmem>>, vector<1x4x256xbf16>
    %30 = vector.shape_cast %29 : vector<1x4x256xbf16> to vector<4x256xbf16>
    %cst_27 = arith.constant dense<0.000000e+00> : vector<64x256xf32>
    %31 = tpu.matmul %28, %30, %cst_27 {dimension_numbers = #tpu.dot_dimension_numbers<[1], [0], [0], [1], [0, 0, 1, 1], [], []>} : vector<64x4xbf16>, vector<4x256xbf16>, vector<64x256xf32> -> vector<64x256xf32>
    %32 = arith.addf %24, %31 : vector<64x256xf32>
    %c0_28 = arith.constant 0 : index
    %c1_29 = arith.constant 1 : index
    %c1_30 = arith.constant 1 : index
    %c0_31 = arith.constant 0 : index
    %33 = vector.load %arg1[%c0_28, %c1_29, %c1_30, %c0_31] : memref<1x10x10x4xf32, #tpu.memory_space<vmem>>, vector<1x8x8x4xf32>
    %34 = vector.shape_cast %33 : vector<1x8x8x4xf32> to vector<8x8x4xf32>
    %35 = vector.shape_cast %34 : vector<8x8x4xf32> to vector<64x4xf32>
    %36 = arith.truncf %35 : vector<64x4xf32> to vector<64x4xbf16>
    %c4 = arith.constant 4 : index
    %c0_32 = arith.constant 0 : index
    %c0_33 = arith.constant 0 : index
    %37 = vector.load %arg2[%c4, %c0_32, %c0_33] : memref<9x4x256xbf16, #tpu.memory_space<vmem>>, vector<1x4x256xbf16>
    %38 = vector.shape_cast %37 : vector<1x4x256xbf16> to vector<4x256xbf16>
    %cst_34 = arith.constant dense<0.000000e+00> : vector<64x256xf32>
    %39 = tpu.matmul %36, %38, %cst_34 {dimension_numbers = #tpu.dot_dimension_numbers<[1], [0], [0], [1], [0, 0, 1, 1], [], []>} : vector<64x4xbf16>, vector<4x256xbf16>, vector<64x256xf32> -> vector<64x256xf32>
    %40 = arith.addf %32, %39 : vector<64x256xf32>
    %c0_35 = arith.constant 0 : index
    %c1_36 = arith.constant 1 : index
    %c2_37 = arith.constant 2 : index
    %c0_38 = arith.constant 0 : index
    %41 = vector.load %arg1[%c0_35, %c1_36, %c2_37, %c0_38] : memref<1x10x10x4xf32, #tpu.memory_space<vmem>>, vector<1x8x8x4xf32>
    %42 = vector.shape_cast %41 : vector<1x8x8x4xf32> to vector<8x8x4xf32>
    %43 = vector.shape_cast %42 : vector<8x8x4xf32> to vector<64x4xf32>
    %44 = arith.truncf %43 : vector<64x4xf32> to vector<64x4xbf16>
    %c5 = arith.constant 5 : index
    %c0_39 = arith.constant 0 : index
    %c0_40 = arith.constant 0 : index
    %45 = vector.load %arg2[%c5, %c0_39, %c0_40] : memref<9x4x256xbf16, #tpu.memory_space<vmem>>, vector<1x4x256xbf16>
    %46 = vector.shape_cast %45 : vector<1x4x256xbf16> to vector<4x256xbf16>
    %cst_41 = arith.constant dense<0.000000e+00> : vector<64x256xf32>
    %47 = tpu.matmul %44, %46, %cst_41 {dimension_numbers = #tpu.dot_dimension_numbers<[1], [0], [0], [1], [0, 0, 1, 1], [], []>} : vector<64x4xbf16>, vector<4x256xbf16>, vector<64x256xf32> -> vector<64x256xf32>
    %48 = arith.addf %40, %47 : vector<64x256xf32>
    %c0_42 = arith.constant 0 : index
    %c2_43 = arith.constant 2 : index
    %c0_44 = arith.constant 0 : index
    %c0_45 = arith.constant 0 : index
    %49 = vector.load %arg1[%c0_42, %c2_43, %c0_44, %c0_45] : memref<1x10x10x4xf32, #tpu.memory_space<vmem>>, vector<1x8x8x4xf32>
    %50 = vector.shape_cast %49 : vector<1x8x8x4xf32> to vector<8x8x4xf32>
    %51 = vector.shape_cast %50 : vector<8x8x4xf32> to vector<64x4xf32>
    %52 = arith.truncf %51 : vector<64x4xf32> to vector<64x4xbf16>
    %c6 = arith.constant 6 : index
    %c0_46 = arith.constant 0 : index
    %c0_47 = arith.constant 0 : index
    %53 = vector.load %arg2[%c6, %c0_46, %c0_47] : memref<9x4x256xbf16, #tpu.memory_space<vmem>>, vector<1x4x256xbf16>
    %54 = vector.shape_cast %53 : vector<1x4x256xbf16> to vector<4x256xbf16>
    %cst_48 = arith.constant dense<0.000000e+00> : vector<64x256xf32>
    %55 = tpu.matmul %52, %54, %cst_48 {dimension_numbers = #tpu.dot_dimension_numbers<[1], [0], [0], [1], [0, 0, 1, 1], [], []>} : vector<64x4xbf16>, vector<4x256xbf16>, vector<64x256xf32> -> vector<64x256xf32>
    %56 = arith.addf %48, %55 : vector<64x256xf32>
    %c0_49 = arith.constant 0 : index
    %c2_50 = arith.constant 2 : index
    %c1_51 = arith.constant 1 : index
    %c0_52 = arith.constant 0 : index
    %57 = vector.load %arg1[%c0_49, %c2_50, %c1_51, %c0_52] : memref<1x10x10x4xf32, #tpu.memory_space<vmem>>, vector<1x8x8x4xf32>
    %58 = vector.shape_cast %57 : vector<1x8x8x4xf32> to vector<8x8x4xf32>
    %59 = vector.shape_cast %58 : vector<8x8x4xf32> to vector<64x4xf32>
    %60 = arith.truncf %59 : vector<64x4xf32> to vector<64x4xbf16>
    %c7 = arith.constant 7 : index
    %c0_53 = arith.constant 0 : index
    %c0_54 = arith.constant 0 : index
    %61 = vector.load %arg2[%c7, %c0_53, %c0_54] : memref<9x4x256xbf16, #tpu.memory_space<vmem>>, vector<1x4x256xbf16>
    %62 = vector.shape_cast %61 : vector<1x4x256xbf16> to vector<4x256xbf16>
    %cst_55 = arith.constant dense<0.000000e+00> : vector<64x256xf32>
    %63 = tpu.matmul %60, %62, %cst_55 {dimension_numbers = #tpu.dot_dimension_numbers<[1], [0], [0], [1], [0, 0, 1, 1], [], []>} : vector<64x4xbf16>, vector<4x256xbf16>, vector<64x256xf32> -> vector<64x256xf32>
    %64 = arith.addf %56, %63 : vector<64x256xf32>
    %c0_56 = arith.constant 0 : index
    %c2_57 = arith.constant 2 : index
    %c2_58 = arith.constant 2 : index
    %c0_59 = arith.constant 0 : index
    %65 = vector.load %arg1[%c0_56, %c2_57, %c2_58, %c0_59] : memref<1x10x10x4xf32, #tpu.memory_space<vmem>>, vector<1x8x8x4xf32>
    %66 = vector.shape_cast %65 : vector<1x8x8x4xf32> to vector<8x8x4xf32>
    %67 = vector.shape_cast %66 : vector<8x8x4xf32> to vector<64x4xf32>
    %68 = arith.truncf %67 : vector<64x4xf32> to vector<64x4xbf16>
    %c8 = arith.constant 8 : index
    %c0_60 = arith.constant 0 : index
    %c0_61 = arith.constant 0 : index
    %69 = vector.load %arg2[%c8, %c0_60, %c0_61] : memref<9x4x256xbf16, #tpu.memory_space<vmem>>, vector<1x4x256xbf16>
    %70 = vector.shape_cast %69 : vector<1x4x256xbf16> to vector<4x256xbf16>
    %cst_62 = arith.constant dense<0.000000e+00> : vector<64x256xf32>
    %71 = tpu.matmul %68, %70, %cst_62 {dimension_numbers = #tpu.dot_dimension_numbers<[1], [0], [0], [1], [0, 0, 1, 1], [], []>} : vector<64x4xbf16>, vector<4x256xbf16>, vector<64x256xf32> -> vector<64x256xf32>
    %72 = arith.addf %64, %71 : vector<64x256xf32>
    %c0_63 = arith.constant 0 : index
    %c0_64 = arith.constant 0 : index
    %73 = vector.load %arg3[%c0_63, %c0_64] : memref<1x256xf32, #tpu.memory_space<vmem>>, vector<1x256xf32>
    %74 = vector.broadcast %73 : vector<1x256xf32> to vector<64x256xf32>
    %75 = arith.addf %72, %74 : vector<64x256xf32>
    %cst_65 = arith.constant 0.000000e+00 : f32
    %76 = vector.broadcast %cst_65 : f32 to vector<64x256xf32>
    %77 = arith.maximumf %75, %76 : vector<64x256xf32>
    %78 = arith.truncf %77 : vector<64x256xf32> to vector<64x256xbf16>
    %c0_66 = arith.constant 0 : index
    %c0_67 = arith.constant 0 : index
    %79 = vector.load %arg4[%c0_66, %c0_67] : memref<8x256xbf16, #tpu.memory_space<vmem>>, vector<8x256xbf16>
    %cst_68 = arith.constant dense<0.000000e+00> : vector<8x64xf32>
    %80 = tpu.matmul %79, %78, %cst_68 {dimension_numbers = #tpu.dot_dimension_numbers<[1], [1], [0], [0], [0, 0, 1, 0], [], []>} : vector<8x256xbf16>, vector<64x256xbf16>, vector<8x64xf32> -> vector<8x64xf32>
    %c0_69 = arith.constant 0 : index
    %c0_70 = arith.constant 0 : index
    %81 = vector.load %arg5[%c0_69, %c0_70] : memref<8x1xf32, #tpu.memory_space<vmem>>, vector<8x1xf32>
    %82 = vector.broadcast %81 : vector<8x1xf32> to vector<8x64xf32>
    %83 = arith.addf %80, %82 : vector<8x64xf32>
    %c0_71 = arith.constant 0 : index
    %c0_72 = arith.constant 0 : index
    %84 = vector.load %arg7[%c0_71, %c0_72] : memref<8x16xf32, #tpu.memory_space<vmem>>, vector<8x16xf32>
    %85 = vector.extract_strided_slice %83 {offsets = [0, 0], sizes = [8, 8], strides = [1, 1]} : vector<8x64xf32> to vector<8x8xf32>
    %cst_73 = arith.constant dense<0.000000e+00> : vector<8x16xf32>
    %86 = tpu.matmul %85, %84, %cst_73 {dimension_numbers = #tpu.dot_dimension_numbers<[1], [0], [0], [1], [0, 0, 1, 1], [], []>} : vector<8x8xf32>, vector<8x16xf32>, vector<8x16xf32> -> vector<8x16xf32>
    %c0_74 = arith.constant 0 : index
    %c0_75 = arith.constant 0 : index
    %87 = vector.load %arg9[%c0_74, %c0_75] : memref<64x16xf32, #tpu.memory_space<vmem>>, vector<8x16xf32>
    tpu.vector_store %arg9[%c0_74, %c0_75], %86 {strides = array<i32>} : memref<64x16xf32, #tpu.memory_space<vmem>>, vector<8x16xf32>,
    %88 = vector.extract_strided_slice %83 {offsets = [0, 8], sizes = [8, 8], strides = [1, 1]} : vector<8x64xf32> to vector<8x8xf32>
    %cst_76 = arith.constant dense<0.000000e+00> : vector<8x16xf32>
    %89 = tpu.matmul %88, %84, %cst_76 {dimension_numbers = #tpu.dot_dimension_numbers<[1], [0], [0], [1], [0, 0, 1, 1], [], []>} : vector<8x8xf32>, vector<8x16xf32>, vector<8x16xf32> -> vector<8x16xf32>
    %c8_77 = arith.constant 8 : index
    %c0_78 = arith.constant 0 : index
    %90 = vector.load %arg9[%c8_77, %c0_78] : memref<64x16xf32, #tpu.memory_space<vmem>>, vector<8x16xf32>
    tpu.vector_store %arg9[%c8_77, %c0_78], %89 {strides = array<i32>} : memref<64x16xf32, #tpu.memory_space<vmem>>, vector<8x16xf32>,
    %91 = vector.extract_strided_slice %83 {offsets = [0, 16], sizes = [8, 8], strides = [1, 1]} : vector<8x64xf32> to vector<8x8xf32>
    %cst_79 = arith.constant dense<0.000000e+00> : vector<8x16xf32>
    %92 = tpu.matmul %91, %84, %cst_79 {dimension_numbers = #tpu.dot_dimension_numbers<[1], [0], [0], [1], [0, 0, 1, 1], [], []>} : vector<8x8xf32>, vector<8x16xf32>, vector<8x16xf32> -> vector<8x16xf32>
    %c16 = arith.constant 16 : index
    %c0_80 = arith.constant 0 : index
    %93 = vector.load %arg9[%c16, %c0_80] : memref<64x16xf32, #tpu.memory_space<vmem>>, vector<8x16xf32>
    tpu.vector_store %arg9[%c16, %c0_80], %92 {strides = array<i32>} : memref<64x16xf32, #tpu.memory_space<vmem>>, vector<8x16xf32>,
    %94 = vector.extract_strided_slice %83 {offsets = [0, 24], sizes = [8, 8], strides = [1, 1]} : vector<8x64xf32> to vector<8x8xf32>
    %cst_81 = arith.constant dense<0.000000e+00> : vector<8x16xf32>
    %95 = tpu.matmul %94, %84, %cst_81 {dimension_numbers = #tpu.dot_dimension_numbers<[1], [0], [0], [1], [0, 0, 1, 1], [], []>} : vector<8x8xf32>, vector<8x16xf32>, vector<8x16xf32> -> vector<8x16xf32>
    %c24 = arith.constant 24 : index
    %c0_82 = arith.constant 0 : index
    %96 = vector.load %arg9[%c24, %c0_82] : memref<64x16xf32, #tpu.memory_space<vmem>>, vector<8x16xf32>
    tpu.vector_store %arg9[%c24, %c0_82], %95 {strides = array<i32>} : memref<64x16xf32, #tpu.memory_space<vmem>>, vector<8x16xf32>,
    %97 = vector.extract_strided_slice %83 {offsets = [0, 32], sizes = [8, 8], strides = [1, 1]} : vector<8x64xf32> to vector<8x8xf32>
    %cst_83 = arith.constant dense<0.000000e+00> : vector<8x16xf32>
    %98 = tpu.matmul %97, %84, %cst_83 {dimension_numbers = #tpu.dot_dimension_numbers<[1], [0], [0], [1], [0, 0, 1, 1], [], []>} : vector<8x8xf32>, vector<8x16xf32>, vector<8x16xf32> -> vector<8x16xf32>
    %c32 = arith.constant 32 : index
    %c0_84 = arith.constant 0 : index
    %99 = vector.load %arg9[%c32, %c0_84] : memref<64x16xf32, #tpu.memory_space<vmem>>, vector<8x16xf32>
    tpu.vector_store %arg9[%c32, %c0_84], %98 {strides = array<i32>} : memref<64x16xf32, #tpu.memory_space<vmem>>, vector<8x16xf32>,
    %100 = vector.extract_strided_slice %83 {offsets = [0, 40], sizes = [8, 8], strides = [1, 1]} : vector<8x64xf32> to vector<8x8xf32>
    %cst_85 = arith.constant dense<0.000000e+00> : vector<8x16xf32>
    %101 = tpu.matmul %100, %84, %cst_85 {dimension_numbers = #tpu.dot_dimension_numbers<[1], [0], [0], [1], [0, 0, 1, 1], [], []>} : vector<8x8xf32>, vector<8x16xf32>, vector<8x16xf32> -> vector<8x16xf32>
    %c40 = arith.constant 40 : index
    %c0_86 = arith.constant 0 : index
    %102 = vector.load %arg9[%c40, %c0_86] : memref<64x16xf32, #tpu.memory_space<vmem>>, vector<8x16xf32>
    tpu.vector_store %arg9[%c40, %c0_86], %101 {strides = array<i32>} : memref<64x16xf32, #tpu.memory_space<vmem>>, vector<8x16xf32>,
    %103 = vector.extract_strided_slice %83 {offsets = [0, 48], sizes = [8, 8], strides = [1, 1]} : vector<8x64xf32> to vector<8x8xf32>
    %cst_87 = arith.constant dense<0.000000e+00> : vector<8x16xf32>
    %104 = tpu.matmul %103, %84, %cst_87 {dimension_numbers = #tpu.dot_dimension_numbers<[1], [0], [0], [1], [0, 0, 1, 1], [], []>} : vector<8x8xf32>, vector<8x16xf32>, vector<8x16xf32> -> vector<8x16xf32>
    %c48 = arith.constant 48 : index
    %c0_88 = arith.constant 0 : index
    %105 = vector.load %arg9[%c48, %c0_88] : memref<64x16xf32, #tpu.memory_space<vmem>>, vector<8x16xf32>
    tpu.vector_store %arg9[%c48, %c0_88], %104 {strides = array<i32>} : memref<64x16xf32, #tpu.memory_space<vmem>>, vector<8x16xf32>,
    %106 = vector.extract_strided_slice %83 {offsets = [0, 56], sizes = [8, 8], strides = [1, 1]} : vector<8x64xf32> to vector<8x8xf32>
    %cst_89 = arith.constant dense<0.000000e+00> : vector<8x16xf32>
    %107 = tpu.matmul %106, %84, %cst_89 {dimension_numbers = #tpu.dot_dimension_numbers<[1], [0], [0], [1], [0, 0, 1, 1], [], []>} : vector<8x8xf32>, vector<8x16xf32>, vector<8x16xf32> -> vector<8x16xf32>
    %c56 = arith.constant 56 : index
    %c0_90 = arith.constant 0 : index
    %108 = vector.load %arg9[%c56, %c0_90] : memref<64x16xf32, #tpu.memory_space<vmem>>, vector<8x16xf32>
    tpu.vector_store %arg9[%c56, %c0_90], %107 {strides = array<i32>} : memref<64x16xf32, #tpu.memory_space<vmem>>, vector<8x16xf32>,
    %c0_91 = arith.constant 0 : index
    %c0_92 = arith.constant 0 : index
    %109 = vector.load %arg6[%c0_91, %c0_92] : memref<16x8xf32, #tpu.memory_space<vmem>>, vector<16x8xf32>
    %c0_93 = arith.constant 0 : index
    %c0_94 = arith.constant 0 : index
    %110 = tpu.strided_load %arg9[%c0_93, %c0_94] {strides = array<i32: 8, 1>} : memref<64x16xf32, #tpu.memory_space<vmem>>, vector<8x16xf32>
    %cst_95 = arith.constant dense<0.000000e+00> : vector<16x16xf32>
    %111 = tpu.matmul %109, %110, %cst_95 {dimension_numbers = #tpu.dot_dimension_numbers<[1], [0], [0], [1], [0, 0, 1, 1], [], []>} : vector<16x8xf32>, vector<8x16xf32>, vector<16x16xf32> -> vector<16x16xf32>
    %c0_96 = arith.constant 0 : index
    %c0_97 = arith.constant 0 : index
    %c0_98 = arith.constant 0 : index
    %c0_99 = arith.constant 0 : index
    %112 = vector.load %arg8[%c0_96, %c0_97, %c0_98, %c0_99] : memref<1x8x16x16xf32, #tpu.memory_space<vmem>>, vector<1x1x16x16xf32>
    %113 = vector.shape_cast %112 : vector<1x1x16x16xf32> to vector<16x16xf32>
    %114 = vector.shape_cast %111 : vector<16x16xf32> to vector<1x1x16x16xf32>
    tpu.vector_store %arg8[%c0_96, %c0_97, %c0_98, %c0_99], %114 {strides = array<i32>} : memref<1x8x16x16xf32, #tpu.memory_space<vmem>>, vector<1x1x16x16xf32>,
    %c1_100 = arith.constant 1 : index
    %c0_101 = arith.constant 0 : index
    %115 = tpu.strided_load %arg9[%c1_100, %c0_101] {strides = array<i32: 8, 1>} : memref<64x16xf32, #tpu.memory_space<vmem>>, vector<8x16xf32>
    %cst_102 = arith.constant dense<0.000000e+00> : vector<16x16xf32>
    %116 = tpu.matmul %109, %115, %cst_102 {dimension_numbers = #tpu.dot_dimension_numbers<[1], [0], [0], [1], [0, 0, 1, 1], [], []>} : vector<16x8xf32>, vector<8x16xf32>, vector<16x16xf32> -> vector<16x16xf32>
    %c0_103 = arith.constant 0 : index
    %c1_104 = arith.constant 1 : index
    %c0_105 = arith.constant 0 : index
    %c0_106 = arith.constant 0 : index
    %117 = vector.load %arg8[%c0_103, %c1_104, %c0_105, %c0_106] : memref<1x8x16x16xf32, #tpu.memory_space<vmem>>, vector<1x1x16x16xf32>
    %118 = vector.shape_cast %117 : vector<1x1x16x16xf32> to vector<16x16xf32>
    %119 = vector.shape_cast %116 : vector<16x16xf32> to vector<1x1x16x16xf32>
    tpu.vector_store %arg8[%c0_103, %c1_104, %c0_105, %c0_106], %119 {strides = array<i32>} : memref<1x8x16x16xf32, #tpu.memory_space<vmem>>, vector<1x1x16x16xf32>,
    %c2_107 = arith.constant 2 : index
    %c0_108 = arith.constant 0 : index
    %120 = tpu.strided_load %arg9[%c2_107, %c0_108] {strides = array<i32: 8, 1>} : memref<64x16xf32, #tpu.memory_space<vmem>>, vector<8x16xf32>
    %cst_109 = arith.constant dense<0.000000e+00> : vector<16x16xf32>
    %121 = tpu.matmul %109, %120, %cst_109 {dimension_numbers = #tpu.dot_dimension_numbers<[1], [0], [0], [1], [0, 0, 1, 1], [], []>} : vector<16x8xf32>, vector<8x16xf32>, vector<16x16xf32> -> vector<16x16xf32>
    %c0_110 = arith.constant 0 : index
    %c2_111 = arith.constant 2 : index
    %c0_112 = arith.constant 0 : index
    %c0_113 = arith.constant 0 : index
    %122 = vector.load %arg8[%c0_110, %c2_111, %c0_112, %c0_113] : memref<1x8x16x16xf32, #tpu.memory_space<vmem>>, vector<1x1x16x16xf32>
    %123 = vector.shape_cast %122 : vector<1x1x16x16xf32> to vector<16x16xf32>
    %124 = vector.shape_cast %121 : vector<16x16xf32> to vector<1x1x16x16xf32>
    tpu.vector_store %arg8[%c0_110, %c2_111, %c0_112, %c0_113], %124 {strides = array<i32>} : memref<1x8x16x16xf32, #tpu.memory_space<vmem>>, vector<1x1x16x16xf32>,
    %c3_114 = arith.constant 3 : index
    %c0_115 = arith.constant 0 : index
    %125 = tpu.strided_load %arg9[%c3_114, %c0_115] {strides = array<i32: 8, 1>} : memref<64x16xf32, #tpu.memory_space<vmem>>, vector<8x16xf32>
    %cst_116 = arith.constant dense<0.000000e+00> : vector<16x16xf32>
    %126 = tpu.matmul %109, %125, %cst_116 {dimension_numbers = #tpu.dot_dimension_numbers<[1], [0], [0], [1], [0, 0, 1, 1], [], []>} : vector<16x8xf32>, vector<8x16xf32>, vector<16x16xf32> -> vector<16x16xf32>
    %c0_117 = arith.constant 0 : index
    %c3_118 = arith.constant 3 : index
    %c0_119 = arith.constant 0 : index
    %c0_120 = arith.constant 0 : index
    %127 = vector.load %arg8[%c0_117, %c3_118, %c0_119, %c0_120] : memref<1x8x16x16xf32, #tpu.memory_space<vmem>>, vector<1x1x16x16xf32>
    %128 = vector.shape_cast %127 : vector<1x1x16x16xf32> to vector<16x16xf32>
    %129 = vector.shape_cast %126 : vector<16x16xf32> to vector<1x1x16x16xf32>
    tpu.vector_store %arg8[%c0_117, %c3_118, %c0_119, %c0_120], %129 {strides = array<i32>} : memref<1x8x16x16xf32, #tpu.memory_space<vmem>>, vector<1x1x16x16xf32>,
    %c4_121 = arith.constant 4 : index
    %c0_122 = arith.constant 0 : index
    %130 = tpu.strided_load %arg9[%c4_121, %c0_122] {strides = array<i32: 8, 1>} : memref<64x16xf32, #tpu.memory_space<vmem>>, vector<8x16xf32>
    %cst_123 = arith.constant dense<0.000000e+00> : vector<16x16xf32>
    %131 = tpu.matmul %109, %130, %cst_123 {dimension_numbers = #tpu.dot_dimension_numbers<[1], [0], [0], [1], [0, 0, 1, 1], [], []>} : vector<16x8xf32>, vector<8x16xf32>, vector<16x16xf32> -> vector<16x16xf32>
    %c0_124 = arith.constant 0 : index
    %c4_125 = arith.constant 4 : index
    %c0_126 = arith.constant 0 : index
    %c0_127 = arith.constant 0 : index
    %132 = vector.load %arg8[%c0_124, %c4_125, %c0_126, %c0_127] : memref<1x8x16x16xf32, #tpu.memory_space<vmem>>, vector<1x1x16x16xf32>
    %133 = vector.shape_cast %132 : vector<1x1x16x16xf32> to vector<16x16xf32>
    %134 = vector.shape_cast %131 : vector<16x16xf32> to vector<1x1x16x16xf32>
    tpu.vector_store %arg8[%c0_124, %c4_125, %c0_126, %c0_127], %134 {strides = array<i32>} : memref<1x8x16x16xf32, #tpu.memory_space<vmem>>, vector<1x1x16x16xf32>,
    %c5_128 = arith.constant 5 : index
    %c0_129 = arith.constant 0 : index
    %135 = tpu.strided_load %arg9[%c5_128, %c0_129] {strides = array<i32: 8, 1>} : memref<64x16xf32, #tpu.memory_space<vmem>>, vector<8x16xf32>
    %cst_130 = arith.constant dense<0.000000e+00> : vector<16x16xf32>
    %136 = tpu.matmul %109, %135, %cst_130 {dimension_numbers = #tpu.dot_dimension_numbers<[1], [0], [0], [1], [0, 0, 1, 1], [], []>} : vector<16x8xf32>, vector<8x16xf32>, vector<16x16xf32> -> vector<16x16xf32>
    %c0_131 = arith.constant 0 : index
    %c5_132 = arith.constant 5 : index
    %c0_133 = arith.constant 0 : index
    %c0_134 = arith.constant 0 : index
    %137 = vector.load %arg8[%c0_131, %c5_132, %c0_133, %c0_134] : memref<1x8x16x16xf32, #tpu.memory_space<vmem>>, vector<1x1x16x16xf32>
    %138 = vector.shape_cast %137 : vector<1x1x16x16xf32> to vector<16x16xf32>
    %139 = vector.shape_cast %136 : vector<16x16xf32> to vector<1x1x16x16xf32>
    tpu.vector_store %arg8[%c0_131, %c5_132, %c0_133, %c0_134], %139 {strides = array<i32>} : memref<1x8x16x16xf32, #tpu.memory_space<vmem>>, vector<1x1x16x16xf32>,
    %c6_135 = arith.constant 6 : index
    %c0_136 = arith.constant 0 : index
    %140 = tpu.strided_load %arg9[%c6_135, %c0_136] {strides = array<i32: 8, 1>} : memref<64x16xf32, #tpu.memory_space<vmem>>, vector<8x16xf32>
    %cst_137 = arith.constant dense<0.000000e+00> : vector<16x16xf32>
    %141 = tpu.matmul %109, %140, %cst_137 {dimension_numbers = #tpu.dot_dimension_numbers<[1], [0], [0], [1], [0, 0, 1, 1], [], []>} : vector<16x8xf32>, vector<8x16xf32>, vector<16x16xf32> -> vector<16x16xf32>
    %c0_138 = arith.constant 0 : index
    %c6_139 = arith.constant 6 : index
    %c0_140 = arith.constant 0 : index
    %c0_141 = arith.constant 0 : index
    %142 = vector.load %arg8[%c0_138, %c6_139, %c0_140, %c0_141] : memref<1x8x16x16xf32, #tpu.memory_space<vmem>>, vector<1x1x16x16xf32>
    %143 = vector.shape_cast %142 : vector<1x1x16x16xf32> to vector<16x16xf32>
    %144 = vector.shape_cast %141 : vector<16x16xf32> to vector<1x1x16x16xf32>
    tpu.vector_store %arg8[%c0_138, %c6_139, %c0_140, %c0_141], %144 {strides = array<i32>} : memref<1x8x16x16xf32, #tpu.memory_space<vmem>>, vector<1x1x16x16xf32>,
    %c7_142 = arith.constant 7 : index
    %c0_143 = arith.constant 0 : index
    %145 = tpu.strided_load %arg9[%c7_142, %c0_143] {strides = array<i32: 8, 1>} : memref<64x16xf32, #tpu.memory_space<vmem>>, vector<8x16xf32>
    %cst_144 = arith.constant dense<0.000000e+00> : vector<16x16xf32>
    %146 = tpu.matmul %109, %145, %cst_144 {dimension_numbers = #tpu.dot_dimension_numbers<[1], [0], [0], [1], [0, 0, 1, 1], [], []>} : vector<16x8xf32>, vector<8x16xf32>, vector<16x16xf32> -> vector<16x16xf32>
    %c0_145 = arith.constant 0 : index
    %c7_146 = arith.constant 7 : index
    %c0_147 = arith.constant 0 : index
    %c0_148 = arith.constant 0 : index
    %147 = vector.load %arg8[%c0_145, %c7_146, %c0_147, %c0_148] : memref<1x8x16x16xf32, #tpu.memory_space<vmem>>, vector<1x1x16x16xf32>
    %148 = vector.shape_cast %147 : vector<1x1x16x16xf32> to vector<16x16xf32>
    %149 = vector.shape_cast %146 : vector<16x16xf32> to vector<1x1x16x16xf32>
    tpu.vector_store %arg8[%c0_145, %c7_146, %c0_147, %c0_148], %149 {strides = array<i32>} : memref<1x8x16x16xf32, #tpu.memory_space<vmem>>, vector<1x1x16x16xf32>,
    return
  }
  func.func @transform_0(%arg0: i32) -> (i32, i32, i32, i32) {
    %c0_i32 = arith.constant 0 : i32
    %c0_i32_0 = arith.constant 0 : i32
    %c0_i32_1 = arith.constant 0 : i32
    %c0_i32_2 = arith.constant 0 : i32
    return %arg0, %c0_i32, %c0_i32_0, %c0_i32_1 : i32, i32, i32, i32
  }
  func.func @transform_1(%arg0: i32) -> (i32, i32, i32) {
    %c0_i32 = arith.constant 0 : i32
    %c0_i32_0 = arith.constant 0 : i32
    %c0_i32_1 = arith.constant 0 : i32
    %c0_i32_2 = arith.constant 0 : i32
    return %c0_i32, %c0_i32_0, %c0_i32_1 : i32, i32, i32
  }
  func.func @transform_2(%arg0: i32) -> (i32, i32) {
    %c0_i32 = arith.constant 0 : i32
    %c0_i32_0 = arith.constant 0 : i32
    %c0_i32_1 = arith.constant 0 : i32
    return %c0_i32, %c0_i32_0 : i32, i32
  }
  func.func @transform_3(%arg0: i32) -> (i32, i32) {
    %c0_i32 = arith.constant 0 : i32
    %c0_i32_0 = arith.constant 0 : i32
    %c0_i32_1 = arith.constant 0 : i32
    return %c0_i32, %c0_i32_0 : i32, i32
  }
  func.func @transform_4(%arg0: i32) -> (i32, i32) {
    %c0_i32 = arith.constant 0 : i32
    %c0_i32_0 = arith.constant 0 : i32
    %c0_i32_1 = arith.constant 0 : i32
    return %c0_i32, %c0_i32_0 : i32, i32
  }
  func.func @transform_5(%arg0: i32) -> (i32, i32) {
    %c0_i32 = arith.constant 0 : i32
    %c0_i32_0 = arith.constant 0 : i32
    %c0_i32_1 = arith.constant 0 : i32
    return %c0_i32, %c0_i32_0 : i32, i32
  }
  func.func @transform_6(%arg0: i32) -> (i32, i32) {
    %c0_i32 = arith.constant 0 : i32
    %c0_i32_0 = arith.constant 0 : i32
    %c0_i32_1 = arith.constant 0 : i32
    return %c0_i32, %c0_i32_0 : i32, i32
  }
  func.func @transform_7(%arg0: i32) -> (i32, i32, i32, i32) {
    %c0_i32 = arith.constant 0 : i32
    %c0_i32_0 = arith.constant 0 : i32
    %c0_i32_1 = arith.constant 0 : i32
    %c0_i32_2 = arith.constant 0 : i32
    return %arg0, %c0_i32, %c0_i32_0, %c0_i32_1 : i32, i32, i32, i32
  }
}

</mosaic_0001>

<llo_original>
// kernel: tpu_custom_call.1
$region0: #{tpu_custom_call.1}
  #allocation0 [shape = 'u32[]', space=smem, size = 0x4, offset = 0x4, fixed_abs, tag = 'smem constant byte address 0x4 - core index']
  #allocation1 [shape = 'u32[72,128]{1,0:T(1,128)}', space=vmem, size = 0x9000, scoped, tag = 'internal scratch']
  #allocation2 [shape = 'f32[64,16]{1,0:T(8,128)}', space=vmem, size = 0x8000, scoped, tag = 'scratch operand']
  %s0 = inlined_call_operand.vmem [shape: f32[2,10,10,4], index: 0, kind: input, shape index: {}]
  %s1 = inlined_call_operand.vmem [shape: bf16[9,4,256], index: 1, kind: input, shape index: {}]
  %s2 = inlined_call_operand.vmem [shape: f32[1,256], index: 2, kind: input, shape index: {}]
  %s3 = inlined_call_operand.vmem [shape: bf16[8,256], index: 3, kind: input, shape index: {}]
  %s4 = inlined_call_operand.vmem [shape: f32[8,1], index: 4, kind: input, shape index: {}]
  %s5 = inlined_call_operand.vmem [shape: f32[16,8], index: 5, kind: input, shape index: {}]
  %s6 = inlined_call_operand.vmem [shape: f32[8,16], index: 6, kind: input, shape index: {}]
  %s7 = inlined_call_operand.hbm [shape: f32[2,8,16,16], index: 7, kind: output, shape index: {}]
  %s8 = sld [smem:[#allocation0]]
  $region61: #{tpu_custom_call.1} parent=0
    _
  %s10 = ssub.s32 1, %s8
  %s11 = scalar_select 0, %s10, %s8
  $region1: #{tpu_custom_call.1} parent=0
    #allocation3 [shape = 'u8[131072]{0}', space=vmem, size = 0x20000, scoped, tag = 'output window, operand 0']
    #allocation4 [shape = 's32[2]{0}', space=sflag, size = 0x8, scoped, tag = 'scoped memory for tpu_custom_call.1']
    %12 = vsyncpa [#allocation4], 0
    %s13 = scalar_lea.sflag [#allocation4], 1
    %14 = vsyncpa %s13, 0
    loop: start=0, step=1, limit=4
    $region2: #{tpu_custom_call.1} parent=1 // loop_pre_header
      _
    $region3: #{tpu_custom_call.1} parent=1 // loop_header
      %s16 = sphi 0, %s20
      %p17 = scmp.ge.s32.totalorder %s16, 4
      %s26 = sphi 0, %s28
      %s29 = sphi 0, %s26
      %s30 = sphi 0, %s29
      %s46 = sphi 0, %s30
      %s50 = sphi 0, %s50
      %s52 = sphi 0, %s50
      %s53 = sphi 0, %s52
      %s67 = sphi 0, %s53
      %s71 = sphi 0, %s71
      %s73 = sphi 0, %s71
      %s74 = sphi 0, %s73
      %s88 = sphi 0, %s74
      %s92 = sphi 0, %s92
      %s94 = sphi 0, %s92
      %s95 = sphi 0, %s94
      %s109 = sphi 0, %s95
      %s113 = sphi 0, %s113
      %s115 = sphi 0, %s113
      %s116 = sphi 0, %s115
      %s130 = sphi 0, %s116
      %s134 = sphi 0, %s134
      %s136 = sphi 0, %s134
      %s137 = sphi 0, %s136
      %s151 = sphi 0, %s137
      %s155 = sphi 0, %s155
      %s157 = sphi 0, %s155
      %s158 = sphi 0, %s157
      %s172 = sphi 0, %s158
      %s178 = sphi 0, %s180
      %s181 = sphi 0, %s178
      %s182 = sphi 0, %s181
      %s198 = sphi 0, %s182
    $region4: #{tpu_custom_call.1} parent=1 // loop_header_branch
      %19 = sbr.rel (%p17) target = $region8
    $region5: #{tpu_custom_call.1} parent=1 // loop_body
      %s21 = ssub.s32 %s16, 1
      %s22 = ssub.s32 %s16, 2
      %s23 = sadd.s32 %s16, 1
      %s24 = ssub.s32 %s16, %s23
      %p25 = scmp.eq.s32.totalorder %s24, 0
      %s27 = sadd.s32 %s26, 1
      %s28 = scalar_select %p25, %s26, %s27
      %p31 = pneg %p25
      %p32 = scmp.eq.s32.totalorder %s16, 1
      %p33 = por %p31, %p32
      %p34 = scmp.ne.s32.totalorder %s26, %s29
      %p35 = scmp.eq.s32.totalorder %s16, 0
      %p36 = por %p34, %p35
      %p37 = scmp.ne.s32.totalorder %s26, %s29
      %p38 = scmp.eq.s32.totalorder %s21, 1
      %p39 = por %p37, %p38
      %p40 = scmp.ne.s32.totalorder %s29, %s30
      %p41 = scmp.eq.s32.totalorder %s21, 0
      %p42 = por %p40, %p41
      %p43 = scmp.ne.s32.totalorder %s29, %s30
      %p44 = scmp.eq.s32.totalorder %s22, 1
      %p45 = por %p43, %p44
      %p47 = scmp.ne.s32.totalorder %s30, %s46
      %p48 = scmp.eq.s32.totalorder %s22, 0
      %p49 = por %p47, %p48
      %s51 = sadd.s32 %s50, 1
      %p54 = scmp.eq.s32.totalorder %s16, 1
      %p55 = scmp.ne.s32.totalorder %s50, %s52
      %p56 = scmp.eq.s32.totalorder %s16, 0
      %p57 = por %p55, %p56
      %p58 = scmp.ne.s32.totalorder %s50, %s52
      %p59 = scmp.eq.s32.totalorder %s21, 1
      %p60 = por %p58, %p59
      %p61 = scmp.ne.s32.totalorder %s52, %s53
      %p62 = scmp.eq.s32.totalorder %s21, 0
      %p63 = por %p61, %p62
      %p64 = scmp.ne.s32.totalorder %s52, %s53
      %p65 = scmp.eq.s32.totalorder %s22, 1
      %p66 = por %p64, %p65
      %p68 = scmp.ne.s32.totalorder %s53, %s67
      %p69 = scmp.eq.s32.totalorder %s22, 0
      %p70 = por %p68, %p69
      %s72 = sadd.s32 %s71, 1
      %p75 = scmp.eq.s32.totalorder %s16, 1
      %p76 = scmp.ne.s32.totalorder %s71, %s73
      %p77 = scmp.eq.s32.totalorder %s16, 0
      %p78 = por %p76, %p77
      %p79 = scmp.ne.s32.totalorder %s71, %s73
      %p80 = scmp.eq.s32.totalorder %s21, 1
      %p81 = por %p79, %p80
      %p82 = scmp.ne.s32.totalorder %s73, %s74
      %p83 = scmp.eq.s32.totalorder %s21, 0
      %p84 = por %p82, %p83
      %p85 = scmp.ne.s32.totalorder %s73, %s74
      %p86 = scmp.eq.s32.totalorder %s22, 1
      %p87 = por %p85, %p86
      %p89 = scmp.ne.s32.totalorder %s74, %s88
      %p90 = scmp.eq.s32.totalorder %s22, 0
      %p91 = por %p89, %p90
      %s93 = sadd.s32 %s92, 1
      %p96 = scmp.eq.s32.totalorder %s16, 1
      %p97 = scmp.ne.s32.totalorder %s92, %s94
      %p98 = scmp.eq.s32.totalorder %s16, 0
      %p99 = por %p97, %p98
      %p100 = scmp.ne.s32.totalorder %s92, %s94
      %p101 = scmp.eq.s32.totalorder %s21, 1
      %p102 = por %p100, %p101
      %p103 = scmp.ne.s32.totalorder %s94, %s95
      %p104 = scmp.eq.s32.totalorder %s21, 0
      %p105 = por %p103, %p104
      %p106 = scmp.ne.s32.totalorder %s94, %s95
      %p107 = scmp.eq.s32.totalorder %s22, 1
      %p108 = por %p106, %p107
      %p110 = scmp.ne.s32.totalorder %s95, %s109
      %p111 = scmp.eq.s32.totalorder %s22, 0
      %p112 = por %p110, %p111
      %s114 = sadd.s32 %s113, 1
      %p117 = scmp.eq.s32.totalorder %s16, 1
      %p118 = scmp.ne.s32.totalorder %s113, %s115
      %p119 = scmp.eq.s32.totalorder %s16, 0
      %p120 = por %p118, %p119
      %p121 = scmp.ne.s32.totalorder %s113, %s115
      %p122 = scmp.eq.s32.totalorder %s21, 1
      %p123 = por %p121, %p122
      %p124 = scmp.ne.s32.totalorder %s115, %s116
      %p125 = scmp.eq.s32.totalorder %s21, 0
      %p126 = por %p124, %p125
      %p127 = scmp.ne.s32.totalorder %s115, %s116
      %p128 = scmp.eq.s32.totalorder %s22, 1
      %p129 = por %p127, %p128
      %p131 = scmp.ne.s32.totalorder %s116, %s130
      %p132 = scmp.eq.s32.totalorder %s22, 0
      %p133 = por %p131, %p132
      %s135 = sadd.s32 %s134, 1
      %p138 = scmp.eq.s32.totalorder %s16, 1
      %p139 = scmp.ne.s32.totalorder %s134, %s136
      %p140 = scmp.eq.s32.totalorder %s16, 0
      %p141 = por %p139, %p140
      %p142 = scmp.ne.s32.totalorder %s134, %s136
      %p143 = scmp.eq.s32.totalorder %s21, 1
      %p144 = por %p142, %p143
      %p145 = scmp.ne.s32.totalorder %s136, %s137
      %p146 = scmp.eq.s32.totalorder %s21, 0
      %p147 = por %p145, %p146
      %p148 = scmp.ne.s32.totalorder %s136, %s137
      %p149 = scmp.eq.s32.totalorder %s22, 1
      %p150 = por %p148, %p149
      %p152 = scmp.ne.s32.totalorder %s137, %s151
      %p153 = scmp.eq.s32.totalorder %s22, 0
      %p154 = por %p152, %p153
      %s156 = sadd.s32 %s155, 1
      %p159 = scmp.eq.s32.totalorder %s16, 1
      %p160 = scmp.ne.s32.totalorder %s155, %s157
      %p161 = scmp.eq.s32.totalorder %s16, 0
      %p162 = por %p160, %p161
      %p163 = scmp.ne.s32.totalorder %s155, %s157
      %p164 = scmp.eq.s32.totalorder %s21, 1
      %p165 = por %p163, %p164
      %p166 = scmp.ne.s32.totalorder %s157, %s158
      %p167 = scmp.eq.s32.totalorder %s21, 0
      %p168 = por %p166, %p167
      %p169 = scmp.ne.s32.totalorder %s157, %s158
      %p170 = scmp.eq.s32.totalorder %s22, 1
      %p171 = por %p169, %p170
      %p173 = scmp.ne.s32.totalorder %s158, %s172
      %p174 = scmp.eq.s32.totalorder %s22, 0
      %p175 = por %p173, %p174
      %s176 = ssub.s32 %s16, %s23
      %p177 = scmp.eq.s32.totalorder %s176, 0
      %s179 = sadd.s32 %s178, 1
      %s180 = scalar_select %p177, %s178, %s179
      %p183 = pneg %p177
      %p184 = scmp.eq.s32.totalorder %s16, 1
      %p185 = por %p183, %p184
      %p186 = scmp.ne.s32.totalorder %s178, %s181
      %p187 = scmp.eq.s32.totalorder %s16, 0
      %p188 = por %p186, %p187
      %p189 = scmp.ne.s32.totalorder %s178, %s181
      %p190 = scmp.eq.s32.totalorder %s21, 1
      %p191 = por %p189, %p190
      %p192 = scmp.ne.s32.totalorder %s181, %s182
      %p193 = scmp.eq.s32.totalorder %s21, 0
      %p194 = por %p192, %p193
      %p195 = scmp.ne.s32.totalorder %s181, %s182
      %p196 = scmp.eq.s32.totalorder %s22, 1
      %p197 = por %p195, %p196
      %p199 = scmp.ne.s32.totalorder %s182, %s198
      %p200 = scmp.eq.s32.totalorder %s22, 0
      %p201 = por %p199, %p200
      %p202 = scmp.le.s32.totalorder 1, %s16
      %p203 = scmp.lt.s32.totalorder %s16, 3
      %p204 = pnand %p202, %p203
      %p205 = pneg %p204
      // Predicated region
      $region9: #{tpu_custom_call.1} parent=5 // pred_check
        _
      $region10: #{tpu_custom_call.1} parent=5 // pred_check_branch
        %207 = sbr.rel (%p204) target = $region12
      $region11: #{tpu_custom_call.1} parent=5 // pred_region
        %s208 = ssub.s32 %s16, 1
        // Predicated region
        $region13: #{tpu_custom_call.1} parent=11 // pred_check
          %p209 = pneg %p63
        $region14: #{tpu_custom_call.1} parent=11 // pred_check_branch
          %211 = sbr.rel (%p209) target = $region16
        $region15: #{tpu_custom_call.1} parent=11 // pred_region
          _
        $region16: #{tpu_custom_call.1} parent=11 // pred_fallthru
          _
        // Predicated region
        $region17: #{tpu_custom_call.1} parent=11 // pred_check
          %p212 = pneg %p84
        $region18: #{tpu_custom_call.1} parent=11 // pred_check_branch
          %214 = sbr.rel (%p212) target = $region20
        $region19: #{tpu_custom_call.1} parent=11 // pred_region
          _
        $region20: #{tpu_custom_call.1} parent=11 // pred_fallthru
          _
        // Predicated region
        $region21: #{tpu_custom_call.1} parent=11 // pred_check
          %p215 = pneg %p105
        $region22: #{tpu_custom_call.1} parent=11 // pred_check_branch
          %217 = sbr.rel (%p215) target = $region24
        $region23: #{tpu_custom_call.1} parent=11 // pred_region
          _
        $region24: #{tpu_custom_call.1} parent=11 // pred_fallthru
          _
        // Predicated region
        $region25: #{tpu_custom_call.1} parent=11 // pred_check
          %p218 = pneg %p126
        $region26: #{tpu_custom_call.1} parent=11 // pred_check_branch
          %220 = sbr.rel (%p218) target = $region28
        $region27: #{tpu_custom_call.1} parent=11 // pred_region
          _
        $region28: #{tpu_custom_call.1} parent=11 // pred_fallthru
          _
        // Predicated region
        $region29: #{tpu_custom_call.1} parent=11 // pred_check
          %p221 = pneg %p147
        $region30: #{tpu_custom_call.1} parent=11 // pred_check_branch
          %223 = sbr.rel (%p221) target = $region32
        $region31: #{tpu_custom_call.1} parent=11 // pred_region
          _
        $region32: #{tpu_custom_call.1} parent=11 // pred_fallthru
          _
        // Predicated region
        $region33: #{tpu_custom_call.1} parent=11 // pred_check
          %p224 = pneg %p168
        $region34: #{tpu_custom_call.1} parent=11 // pred_check_branch
          %226 = sbr.rel (%p224) target = $region36
        $region35: #{tpu_custom_call.1} parent=11 // pred_region
          _
        $region36: #{tpu_custom_call.1} parent=11 // pred_fallthru
          _
      $region12: #{tpu_custom_call.1} parent=5 // pred_fallthru
        _
      %p227 = scmp.lt.s32.totalorder %s16, 2
      // Predicated region
      $region37: #{tpu_custom_call.1} parent=5 // pred_check
        %p228 = pneg %p227
      $region38: #{tpu_custom_call.1} parent=5 // pred_check_branch
        %230 = sbr.rel (%p228) target = $region40
      $region39: #{tpu_custom_call.1} parent=5 // pred_region
        // Predicated region
        $region41: #{tpu_custom_call.1} parent=39 // pred_check
          %p231 = pneg %p36
        $region42: #{tpu_custom_call.1} parent=39 // pred_check_branch
          %233 = sbr.rel (%p231) target = $region44
        $region43: #{tpu_custom_call.1} parent=39 // pred_region
          %p234 = scmp.lt.s32.totalorder %s16, 1
          %s235 = scalar_select %p234, %s16, 1
          %s236 = smul.addr %s235, 20
          %s237 = smul.addr %s236, 8
          %s238 = scalar_lea.vmem %s0, %s237
        $region44: #{tpu_custom_call.1} parent=39 // pred_fallthru
          _
      $region40: #{tpu_custom_call.1} parent=5 // pred_fallthru
        _
      %p239 = scmp.le.s32.totalorder 1, %s16
      %p240 = scmp.lt.s32.totalorder %s16, 3
      %p241 = pnand %p239, %p240
      %p242 = pneg %p241
      // Predicated region
      $region45: #{tpu_custom_call.1} parent=5 // pred_check
        _
      $region46: #{tpu_custom_call.1} parent=5 // pred_check_branch
        %244 = sbr.rel (%p241) target = $region48
      $region47: #{tpu_custom_call.1} parent=5 // pred_region
        %s245 = ssub.s32 %s16, 1
        %p246 = scmp.lt.s32.totalorder %s21, 1
        %s247 = scalar_select %p246, %s21, 1
        %s248 = smul.addr %s247, 20
        %s249 = smul.addr %s248, 8
        %s250 = scalar_lea.vmem %s0, %s249
        %p251 = pneg %p42
        %p252 = pneg %p39
        %p253 = pneg %p63
        %p254 = pneg %p60
        %p255 = pneg %p84
        %p256 = pneg %p81
        %p257 = pneg %p105
        %p258 = pneg %p102
        %p259 = pneg %p126
        %p260 = pneg %p123
        %p261 = pneg %p147
        %p262 = pneg %p144
        %p263 = pneg %p168
        %p264 = pneg %p165
        %p265 = pneg %p194
        %p266 = pneg %p191
        %s267 = sand.u32 %s181, 1
        %s268 = scalar_lea.sflag [#allocation4], %s267
        %s269 = sand.u32 %s181, 1
        %s270 = smul.addr %s269, 128
        %s271 = scalar_lea.vmem [#allocation3], %s270
        %p272 = scmp.lt.s32.totalorder %s21, 1
        %s273 = scalar_select %p272, %s21, 1
        %s274 = smul.addr %s273, 20
        %s275 = smul.addr %s274, 8
        %s276 = scalar_lea.vmem %s0, %s275
        %v278 = vld [vmem:[%s276] sm:$0xff]
        %v279 = vld [vmem:[%s276 + $0x10] sm:$0xff]
        %v280 = vld [vmem:[%s276 + $0x20] sm:$0xff]
        %v281 = vld [vmem:[%s276 + $0x30] sm:$0xff]
        %v282 = vld [vmem:[%s276 + $0x40] sm:$0xff]
        %v283 = vld [vmem:[%s276 + $0x50] sm:$0xff]
        %v284 = vld [vmem:[%s276 + $0x60] sm:$0xff]
        %v285 = vld [vmem:[%s276 + $0x70] sm:$0xff]
        %v286 = vpack.c.bf16 %v279, %v278
        %v287 = vpack.c.bf16 %v281, %v280
        %v288 = vpack.c.bf16 %v283, %v282
        %v289 = vpack.c.bf16 %v285, %v284
        %v290 = vld [vmem:[%s1] sm:$0xf]
        %v291 = vld [vmem:[%s276 + $0x1] sm:$0xff]
        %v292 = vld [vmem:[%s276 + $0x11] sm:$0xff]
        %v293 = vld [vmem:[%s276 + $0x21] sm:$0xff]
        %v294 = vld [vmem:[%s276 + $0x31] sm:$0xff]
        %v295 = vld [vmem:[%s276 + $0x41] sm:$0xff]
        %v296 = vld [vmem:[%s276 + $0x51] sm:$0xff]
        %v297 = vld [vmem:[%s276 + $0x61] sm:$0xff]
        %v298 = vld [vmem:[%s276 + $0x71] sm:$0xff]
        %v299 = vpack.c.bf16 %v292, %v291
        %v300 = vpack.c.bf16 %v294, %v293
        %v301 = vpack.c.bf16 %v296, %v295
        %v302 = vpack.c.bf16 %v298, %v297
        %s303 = scalar_lea.vmem %s1, 4
        %v304 = vld [vmem:[%s303] sm:$0xf]
        %306 = vst [vmem:[#allocation1] ss:$4 sm:$0xff] %v304
        %v307 = vld.sshfl [vmem:[#allocation1] sm:$0xff pattern:$0x73625140]
        %v308 = vld.sshfl [vmem:[#allocation1 + $0x8] sm:$0xff pattern:$0x73625140]
        %vm309 = vcmask 31744
        %v311 = vsel %vm309, %v299, 0
        %v314 = vsel %vm309, %v300, 0
        %v317 = vsel %vm309, %v301, 0
        %v320 = vsel %vm309, %v302, 0
        %vm322 = vcmask 1041408
        %v323 = vsel %vm322, %v307, 0
        %v325 = vsel %vm322, %v308, 0
        %327 = vmatpush.bf16.msra.mxu0 0
        %328 = vmatpush.bf16.msra.mxu0 0
        %329 = vmatpush.bf16.msra.mxu0 0
        %330 = vmatpush.bf16.msra.mxu0 0
        %331 = vmatpush.bf16.msra.mxu0 0
        %332 = vmatpush.bf16.msra.mxu0 0
        %333 = vmatpush.bf16.msra.mxu0 0
        %334 = vmatpush.bf16.msra.mxu0 %v323
        %335 = vmatmul.bf16.gmra.mxu0 %v311
        %v336 = vpop.f32.mrf.mxu0
        %v337 = vadd.f32 0.0, %v336
        %v338 = vpop.f32.mrf.mxu0
        %v339 = vadd.f32 0.0, %v338
        %340 = vmatmul.bf16.gmra.mxu0 %v314
        %v341 = vpop.f32.mrf.mxu0
        %v342 = vadd.f32 0.0, %v341
        %v343 = vpop.f32.mrf.mxu0
        %v344 = vadd.f32 0.0, %v343
        %345 = vmatmul.bf16.gmra.mxu0 %v317
        %v346 = vpop.f32.mrf.mxu0
        %v347 = vadd.f32 0.0, %v346
        %v348 = vpop.f32.mrf.mxu0
        %v349 = vadd.f32 0.0, %v348
        %350 = vmatmul.bf16.gmra.mxu0 %v320
        %v351 = vpop.f32.mrf.mxu0
        %v352 = vadd.f32 0.0, %v351
        %v353 = vpop.f32.mrf.mxu0
        %v354 = vadd.f32 0.0, %v353
        %355 = vdwg.mxu0
        %356 = vmatpush.bf16.msra.mxu0 0
        %357 = vmatpush.bf16.msra.mxu0 0
        %358 = vmatpush.bf16.msra.mxu0 0
        %359 = vmatpush.bf16.msra.mxu0 0
        %360 = vmatpush.bf16.msra.mxu0 0
        %361 = vmatpush.bf16.msra.mxu0 0
        %362 = vmatpush.bf16.msra.mxu0 0
        %363 = vmatpush.bf16.msra.mxu0 %v325
        %364 = vmatmul.bf16.gmra.mxu0 %v311
        %v365 = vpop.f32.mrf.mxu0
        %v366 = vadd.f32 0.0, %v365
        %v367 = vpop.f32.mrf.mxu0
        %v368 = vadd.f32 0.0, %v367
        %369 = vmatmul.bf16.gmra.mxu0 %v314
        %v370 = vpop.f32.mrf.mxu0
        %v371 = vadd.f32 0.0, %v370
        %v372 = vpop.f32.mrf.mxu0
        %v373 = vadd.f32 0.0, %v372
        %374 = vmatmul.bf16.gmra.mxu0 %v317
        %v375 = vpop.f32.mrf.mxu0
        %v376 = vadd.f32 0.0, %v375
        %v377 = vpop.f32.mrf.mxu0
        %v378 = vadd.f32 0.0, %v377
        %379 = vmatmul.bf16.gmra.mxu0 %v320
        %v380 = vpop.f32.mrf.mxu0
        %v381 = vadd.f32 0.0, %v380
        %v382 = vpop.f32.mrf.mxu0
        %v383 = vadd.f32 0.0, %v382
        %384 = vdwg.mxu0
        %386 = vst [vmem:[#allocation1] ss:$4 sm:$0xff] %v290
        %v387 = vld.sshfl [vmem:[#allocation1] sm:$0xff pattern:$0x73625140]
        %v388 = vld.sshfl [vmem:[#allocation1 + $0x8] sm:$0xff pattern:$0x73625140]
        %v390 = vsel %vm309, %v286, 0
        %v393 = vsel %vm309, %v287, 0
        %v396 = vsel %vm309, %v288, 0
        %v399 = vsel %vm309, %v289, 0
        %v401 = vsel %vm322, %v387, 0
        %v403 = vsel %vm322, %v388, 0
        %405 = vmatpush.bf16.msra.mxu0 0
        %406 = vmatpush.bf16.msra.mxu0 0
        %407 = vmatpush.bf16.msra.mxu0 0
        %408 = vmatpush.bf16.msra.mxu0 0
        %409 = vmatpush.bf16.msra.mxu0 0
        %410 = vmatpush.bf16.msra.mxu0 0
        %411 = vmatpush.bf16.msra.mxu0 0
        %412 = vmatpush.bf16.msra.mxu0 %v401
        %413 = vmatmul.bf16.gmra.mxu0 %v390
        %v414 = vpop.f32.mrf.mxu0
        %v415 = vadd.f32 %v337, %v414
        %v416 = vpop.f32.mrf.mxu0
        %v417 = vadd.f32 %v339, %v416
        %418 = vmatmul.bf16.gmra.mxu0 %v393
        %v419 = vpop.f32.mrf.mxu0
        %v420 = vadd.f32 %v342, %v419
        %v421 = vpop.f32.mrf.mxu0
        %v422 = vadd.f32 %v344, %v421
        %423 = vmatmul.bf16.gmra.mxu0 %v396
        %v424 = vpop.f32.mrf.mxu0
        %v425 = vadd.f32 %v347, %v424
        %v426 = vpop.f32.mrf.mxu0
        %v427 = vadd.f32 %v349, %v426
        %428 = vmatmul.bf16.gmra.mxu0 %v399
        %v429 = vpop.f32.mrf.mxu0
        %v430 = vadd.f32 %v352, %v429
        %v431 = vpop.f32.mrf.mxu0
        %v432 = vadd.f32 %v354, %v431
        %433 = vdwg.mxu0
        %434 = vmatpush.bf16.msra.mxu0 0
        %435 = vmatpush.bf16.msra.mxu0 0
        %436 = vmatpush.bf16.msra.mxu0 0
        %437 = vmatpush.bf16.msra.mxu0 0
        %438 = vmatpush.bf16.msra.mxu0 0
        %439 = vmatpush.bf16.msra.mxu0 0
        %440 = vmatpush.bf16.msra.mxu0 0
        %441 = vmatpush.bf16.msra.mxu0 %v403
        %442 = vmatmul.bf16.gmra.mxu0 %v390
        %v443 = vpop.f32.mrf.mxu0
        %v444 = vadd.f32 %v366, %v443
        %v445 = vpop.f32.mrf.mxu0
        %v446 = vadd.f32 %v368, %v445
        %447 = vmatmul.bf16.gmra.mxu0 %v393
        %v448 = vpop.f32.mrf.mxu0
        %v449 = vadd.f32 %v371, %v448
        %v450 = vpop.f32.mrf.mxu0
        %v451 = vadd.f32 %v373, %v450
        %452 = vmatmul.bf16.gmra.mxu0 %v396
        %v453 = vpop.f32.mrf.mxu0
        %v454 = vadd.f32 %v376, %v453
        %v455 = vpop.f32.mrf.mxu0
        %v456 = vadd.f32 %v378, %v455
        %457 = vmatmul.bf16.gmra.mxu0 %v399
        %v458 = vpop.f32.mrf.mxu0
        %v459 = vadd.f32 %v381, %v458
        %v460 = vpop.f32.mrf.mxu0
        %v461 = vadd.f32 %v383, %v460
        %462 = vdwg.mxu0
        %v463 = vld [vmem:[%s276 + $0x2] sm:$0xff]
        %v464 = vld [vmem:[%s276 + $0x12] sm:$0xff]
        %v465 = vld [vmem:[%s276 + $0x22] sm:$0xff]
        %v466 = vld [vmem:[%s276 + $0x32] sm:$0xff]
        %v467 = vld [vmem:[%s276 + $0x42] sm:$0xff]
        %v468 = vld [vmem:[%s276 + $0x52] sm:$0xff]
        %v469 = vld [vmem:[%s276 + $0x62] sm:$0xff]
        %v470 = vld [vmem:[%s276 + $0x72] sm:$0xff]
        %v471 = vpack.c.bf16 %v464, %v463
        %v472 = vpack.c.bf16 %v466, %v465
        %v473 = vpack.c.bf16 %v468, %v467
        %v474 = vpack.c.bf16 %v470, %v469
        %s475 = scalar_lea.vmem %s1, 8
        %v476 = vld [vmem:[%s475] sm:$0xf]
        %478 = vst [vmem:[#allocation1] ss:$4 sm:$0xff] %v476
        %v479 = vld.sshfl [vmem:[#allocation1] sm:$0xff pattern:$0x73625140]
        %v480 = vld.sshfl [vmem:[#allocation1 + $0x8] sm:$0xff pattern:$0x73625140]
        %v482 = vsel %vm309, %v471, 0
        %v485 = vsel %vm309, %v472, 0
        %v488 = vsel %vm309, %v473, 0
        %v491 = vsel %vm309, %v474, 0
        %v493 = vsel %vm322, %v479, 0
        %v495 = vsel %vm322, %v480, 0
        %497 = vmatpush.bf16.msra.mxu0 0
        %498 = vmatpush.bf16.msra.mxu0 0
        %499 = vmatpush.bf16.msra.mxu0 0
        %500 = vmatpush.bf16.msra.mxu0 0
        %501 = vmatpush.bf16.msra.mxu0 0
        %502 = vmatpush.bf16.msra.mxu0 0
        %503 = vmatpush.bf16.msra.mxu0 0
        %504 = vmatpush.bf16.msra.mxu0 %v493
        %505 = vmatmul.bf16.gmra.mxu0 %v482
        %v506 = vpop.f32.mrf.mxu0
        %v507 = vadd.f32 0.0, %v506
        %v508 = vpop.f32.mrf.mxu0
        %v509 = vadd.f32 0.0, %v508
        %510 = vmatmul.bf16.gmra.mxu0 %v485
        %v511 = vpop.f32.mrf.mxu0
        %v512 = vadd.f32 0.0, %v511
        %v513 = vpop.f32.mrf.mxu0
        %v514 = vadd.f32 0.0, %v513
        %515 = vmatmul.bf16.gmra.mxu0 %v488
        %v516 = vpop.f32.mrf.mxu0
        %v517 = vadd.f32 0.0, %v516
        %v518 = vpop.f32.mrf.mxu0
        %v519 = vadd.f32 0.0, %v518
        %520 = vmatmul.bf16.gmra.mxu0 %v491
        %v521 = vpop.f32.mrf.mxu0
        %v522 = vadd.f32 0.0, %v521
        %v523 = vpop.f32.mrf.mxu0
        %v524 = vadd.f32 0.0, %v523
        %525 = vdwg.mxu0
        %526 = vmatpush.bf16.msra.mxu0 0
        %527 = vmatpush.bf16.msra.mxu0 0
        %528 = vmatpush.bf16.msra.mxu0 0
        %529 = vmatpush.bf16.msra.mxu0 0
        %530 = vmatpush.bf16.msra.mxu0 0
        %531 = vmatpush.bf16.msra.mxu0 0
        %532 = vmatpush.bf16.msra.mxu0 0
        %533 = vmatpush.bf16.msra.mxu0 %v495
        %534 = vmatmul.bf16.gmra.mxu0 %v482
        %v535 = vpop.f32.mrf.mxu0
        %v536 = vadd.f32 0.0, %v535
        %v537 = vpop.f32.mrf.mxu0
        %v538 = vadd.f32 0.0, %v537
        %539 = vmatmul.bf16.gmra.mxu0 %v485
        %v540 = vpop.f32.mrf.mxu0
        %v541 = vadd.f32 0.0, %v540
        %v542 = vpop.f32.mrf.mxu0
        %v543 = vadd.f32 0.0, %v542
        %544 = vmatmul.bf16.gmra.mxu0 %v488
        %v545 = vpop.f32.mrf.mxu0
        %v546 = vadd.f32 0.0, %v545
        %v547 = vpop.f32.mrf.mxu0
        %v548 = vadd.f32 0.0, %v547
        %549 = vmatmul.bf16.gmra.mxu0 %v491
        %v550 = vpop.f32.mrf.mxu0
        %v551 = vadd.f32 0.0, %v550
        %v552 = vpop.f32.mrf.mxu0
        %v553 = vadd.f32 0.0, %v552
        %554 = vdwg.mxu0
        %v555 = vadd.f32 %v415, %v507
        %v556 = vadd.f32 %v444, %v536
        %v557 = vadd.f32 %v417, %v509
        %v558 = vadd.f32 %v446, %v538
        %v559 = vadd.f32 %v420, %v512
        %v560 = vadd.f32 %v449, %v541
        %v561 = vadd.f32 %v422, %v514
        %v562 = vadd.f32 %v451, %v543
        %v563 = vadd.f32 %v425, %v517
        %v564 = vadd.f32 %v454, %v546
        %v565 = vadd.f32 %v427, %v519
        %v566 = vadd.f32 %v456, %v548
        %v567 = vadd.f32 %v430, %v522
        %v568 = vadd.f32 %v459, %v551
        %v569 = vadd.f32 %v432, %v524
        %v570 = vadd.f32 %v461, %v553
        %s571 = scalar_lea.vmem %s276, 16
        %v572 = vld [vmem:[%s571] sm:$0xff]
        %v573 = vld [vmem:[%s571 + $0x10] sm:$0xff]
        %v574 = vld [vmem:[%s571 + $0x20] sm:$0xff]
        %v575 = vld [vmem:[%s571 + $0x30] sm:$0xff]
        %v576 = vld [vmem:[%s571 + $0x40] sm:$0xff]
        %v577 = vld [vmem:[%s571 + $0x50] sm:$0xff]
        %v578 = vld [vmem:[%s571 + $0x60] sm:$0xff]
        %v579 = vld [vmem:[%s571 + $0x70] sm:$0xff]
        %v580 = vpack.c.bf16 %v573, %v572
        %v581 = vpack.c.bf16 %v575, %v574
        %v582 = vpack.c.bf16 %v577, %v576
        %v583 = vpack.c.bf16 %v579, %v578
        %s584 = scalar_lea.vmem %s1, 12
        %v585 = vld [vmem:[%s584] sm:$0xf]
        %587 = vst [vmem:[#allocation1] ss:$4 sm:$0xff] %v585
        %v588 = vld.sshfl [vmem:[#allocation1] sm:$0xff pattern:$0x73625140]
        %v589 = vld.sshfl [vmem:[#allocation1 + $0x8] sm:$0xff pattern:$0x73625140]
        %v591 = vsel %vm309, %v580, 0
        %v594 = vsel %vm309, %v581, 0
        %v597 = vsel %vm309, %v582, 0
        %v600 = vsel %vm309, %v583, 0
        %v602 = vsel %vm322, %v588, 0
        %v604 = vsel %vm322, %v589, 0
        %606 = vmatpush.bf16.msra.mxu0 0
        %607 = vmatpush.bf16.msra.mxu0 0
        %608 = vmatpush.bf16.msra.mxu0 0
        %609 = vmatpush.bf16.msra.mxu0 0
        %610 = vmatpush.bf16.msra.mxu0 0
        %611 = vmatpush.bf16.msra.mxu0 0
        %612 = vmatpush.bf16.msra.mxu0 0
        %613 = vmatpush.bf16.msra.mxu0 %v602
        %614 = vmatmul.bf16.gmra.mxu0 %v591
        %v615 = vpop.f32.mrf.mxu0
        %v616 = vadd.f32 0.0, %v615
        %v617 = vpop.f32.mrf.mxu0
        %v618 = vadd.f32 0.0, %v617
        %619 = vmatmul.bf16.gmra.mxu0 %v594
        %v620 = vpop.f32.mrf.mxu0
        %v621 = vadd.f32 0.0, %v620
        %v622 = vpop.f32.mrf.mxu0
        %v623 = vadd.f32 0.0, %v622
        %624 = vmatmul.bf16.gmra.mxu0 %v597
        %v625 = vpop.f32.mrf.mxu0
        %v626 = vadd.f32 0.0, %v625
        %v627 = vpop.f32.mrf.mxu0
        %v628 = vadd.f32 0.0, %v627
        %629 = vmatmul.bf16.gmra.mxu0 %v600
        %v630 = vpop.f32.mrf.mxu0
        %v631 = vadd.f32 0.0, %v630
        %v632 = vpop.f32.mrf.mxu0
        %v633 = vadd.f32 0.0, %v632
        %634 = vdwg.mxu0
        %635 = vmatpush.bf16.msra.mxu0 0
        %636 = vmatpush.bf16.msra.mxu0 0
        %637 = vmatpush.bf16.msra.mxu0 0
        %638 = vmatpush.bf16.msra.mxu0 0
        %639 = vmatpush.bf16.msra.mxu0 0
        %640 = vmatpush.bf16.msra.mxu0 0
        %641 = vmatpush.bf16.msra.mxu0 0
        %642 = vmatpush.bf16.msra.mxu0 %v604
        %643 = vmatmul.bf16.gmra.mxu0 %v591
        %v644 = vpop.f32.mrf.mxu0
        %v645 = vadd.f32 0.0, %v644
        %v646 = vpop.f32.mrf.mxu0
        %v647 = vadd.f32 0.0, %v646
        %648 = vmatmul.bf16.gmra.mxu0 %v594
        %v649 = vpop.f32.mrf.mxu0
        %v650 = vadd.f32 0.0, %v649
        %v651 = vpop.f32.mrf.mxu0
        %v652 = vadd.f32 0.0, %v651
        %653 = vmatmul.bf16.gmra.mxu0 %v597
        %v654 = vpop.f32.mrf.mxu0
        %v655 = vadd.f32 0.0, %v654
        %v656 = vpop.f32.mrf.mxu0
        %v657 = vadd.f32 0.0, %v656
        %658 = vmatmul.bf16.gmra.mxu0 %v600
        %v659 = vpop.f32.mrf.mxu0
        %v660 = vadd.f32 0.0, %v659
        %v661 = vpop.f32.mrf.mxu0
        %v662 = vadd.f32 0.0, %v661
        %663 = vdwg.mxu0
        %v664 = vadd.f32 %v555, %v616
        %v665 = vadd.f32 %v556, %v645
        %v666 = vadd.f32 %v557, %v618
        %v667 = vadd.f32 %v558, %v647
        %v668 = vadd.f32 %v559, %v621
        %v669 = vadd.f32 %v560, %v650
        %v670 = vadd.f32 %v561, %v623
        %v671 = vadd.f32 %v562, %v652
        %v672 = vadd.f32 %v563, %v626
        %v673 = vadd.f32 %v564, %v655
        %v674 = vadd.f32 %v565, %v628
        %v675 = vadd.f32 %v566, %v657
        %v676 = vadd.f32 %v567, %v631
        %v677 = vadd.f32 %v568, %v660
        %v678 = vadd.f32 %v569, %v633
        %v679 = vadd.f32 %v570, %v662
        %v680 = vld [vmem:[%s571 + $0x1] sm:$0xff]
        %v681 = vld [vmem:[%s571 + $0x11] sm:$0xff]
        %v682 = vld [vmem:[%s571 + $0x21] sm:$0xff]
        %v683 = vld [vmem:[%s571 + $0x31] sm:$0xff]
        %v684 = vld [vmem:[%s571 + $0x41] sm:$0xff]
        %v685 = vld [vmem:[%s571 + $0x51] sm:$0xff]
        %v686 = vld [vmem:[%s571 + $0x61] sm:$0xff]
        %v687 = vld [vmem:[%s571 + $0x71] sm:$0xff]
        %v688 = vpack.c.bf16 %v681, %v680
        %v689 = vpack.c.bf16 %v683, %v682
        %v690 = vpack.c.bf16 %v685, %v684
        %v691 = vpack.c.bf16 %v687, %v686
        %s692 = scalar_lea.vmem %s1, 16
        %v693 = vld [vmem:[%s692] sm:$0xf]
        %695 = vst [vmem:[#allocation1] ss:$4 sm:$0xff] %v693
        %v696 = vld.sshfl [vmem:[#allocation1] sm:$0xff pattern:$0x73625140]
        %v697 = vld.sshfl [vmem:[#allocation1 + $0x8] sm:$0xff pattern:$0x73625140]
        %v699 = vsel %vm309, %v688, 0
        %v702 = vsel %vm309, %v689, 0
        %v705 = vsel %vm309, %v690, 0
        %v708 = vsel %vm309, %v691, 0
        %v710 = vsel %vm322, %v696, 0
        %v712 = vsel %vm322, %v697, 0
        %714 = vmatpush.bf16.msra.mxu0 0
        %715 = vmatpush.bf16.msra.mxu0 0
        %716 = vmatpush.bf16.msra.mxu0 0
        %717 = vmatpush.bf16.msra.mxu0 0
        %718 = vmatpush.bf16.msra.mxu0 0
        %719 = vmatpush.bf16.msra.mxu0 0
        %720 = vmatpush.bf16.msra.mxu0 0
        %721 = vmatpush.bf16.msra.mxu0 %v710
        %722 = vmatmul.bf16.gmra.mxu0 %v699
        %v723 = vpop.f32.mrf.mxu0
        %v724 = vadd.f32 0.0, %v723
        %v725 = vpop.f32.mrf.mxu0
        %v726 = vadd.f32 0.0, %v725
        %727 = vmatmul.bf16.gmra.mxu0 %v702
        %v728 = vpop.f32.mrf.mxu0
        %v729 = vadd.f32 0.0, %v728
        %v730 = vpop.f32.mrf.mxu0
        %v731 = vadd.f32 0.0, %v730
        %732 = vmatmul.bf16.gmra.mxu0 %v705
        %v733 = vpop.f32.mrf.mxu0
        %v734 = vadd.f32 0.0, %v733
        %v735 = vpop.f32.mrf.mxu0
        %v736 = vadd.f32 0.0, %v735
        %737 = vmatmul.bf16.gmra.mxu0 %v708
        %v738 = vpop.f32.mrf.mxu0
        %v739 = vadd.f32 0.0, %v738
        %v740 = vpop.f32.mrf.mxu0
        %v741 = vadd.f32 0.0, %v740
        %742 = vdwg.mxu0
        %743 = vmatpush.bf16.msra.mxu0 0
        %744 = vmatpush.bf16.msra.mxu0 0
        %745 = vmatpush.bf16.msra.mxu0 0
        %746 = vmatpush.bf16.msra.mxu0 0
        %747 = vmatpush.bf16.msra.mxu0 0
        %748 = vmatpush.bf16.msra.mxu0 0
        %749 = vmatpush.bf16.msra.mxu0 0
        %750 = vmatpush.bf16.msra.mxu0 %v712
        %751 = vmatmul.bf16.gmra.mxu0 %v699
        %v752 = vpop.f32.mrf.mxu0
        %v753 = vadd.f32 0.0, %v752
        %v754 = vpop.f32.mrf.mxu0
        %v755 = vadd.f32 0.0, %v754
        %756 = vmatmul.bf16.gmra.mxu0 %v702
        %v757 = vpop.f32.mrf.mxu0
        %v758 = vadd.f32 0.0, %v757
        %v759 = vpop.f32.mrf.mxu0
        %v760 = vadd.f32 0.0, %v759
        %761 = vmatmul.bf16.gmra.mxu0 %v705
        %v762 = vpop.f32.mrf.mxu0
        %v763 = vadd.f32 0.0, %v762
        %v764 = vpop.f32.mrf.mxu0
        %v765 = vadd.f32 0.0, %v764
        %766 = vmatmul.bf16.gmra.mxu0 %v708
        %v767 = vpop.f32.mrf.mxu0
        %v768 = vadd.f32 0.0, %v767
        %v769 = vpop.f32.mrf.mxu0
        %v770 = vadd.f32 0.0, %v769
        %771 = vdwg.mxu0
        %v772 = vadd.f32 %v664, %v724
        %v773 = vadd.f32 %v665, %v753
        %v774 = vadd.f32 %v666, %v726
        %v775 = vadd.f32 %v667, %v755
        %v776 = vadd.f32 %v668, %v729
        %v777 = vadd.f32 %v669, %v758
        %v778 = vadd.f32 %v670, %v731
        %v779 = vadd.f32 %v671, %v760
        %v780 = vadd.f32 %v672, %v734
        %v781 = vadd.f32 %v673, %v763
        %v782 = vadd.f32 %v674, %v736
        %v783 = vadd.f32 %v675, %v765
        %v784 = vadd.f32 %v676, %v739
        %v785 = vadd.f32 %v677, %v768
        %v786 = vadd.f32 %v678, %v741
        %v787 = vadd.f32 %v679, %v770
        %v788 = vld [vmem:[%s571 + $0x2] sm:$0xff]
        %v789 = vld [vmem:[%s571 + $0x12] sm:$0xff]
        %v790 = vld [vmem:[%s571 + $0x22] sm:$0xff]
        %v791 = vld [vmem:[%s571 + $0x32] sm:$0xff]
        %v792 = vld [vmem:[%s571 + $0x42] sm:$0xff]
        %v793 = vld [vmem:[%s571 + $0x52] sm:$0xff]
        %v794 = vld [vmem:[%s571 + $0x62] sm:$0xff]
        %v795 = vld [vmem:[%s571 + $0x72] sm:$0xff]
        %v796 = vpack.c.bf16 %v789, %v788
        %v797 = vpack.c.bf16 %v791, %v790
        %v798 = vpack.c.bf16 %v793, %v792
        %v799 = vpack.c.bf16 %v795, %v794
        %s800 = scalar_lea.vmem %s1, 20
        %v801 = vld [vmem:[%s800] sm:$0xf]
        %803 = vst [vmem:[#allocation1] ss:$4 sm:$0xff] %v801
        %v804 = vld.sshfl [vmem:[#allocation1] sm:$0xff pattern:$0x73625140]
        %v805 = vld.sshfl [vmem:[#allocation1 + $0x8] sm:$0xff pattern:$0x73625140]
        %v807 = vsel %vm309, %v796, 0
        %v810 = vsel %vm309, %v797, 0
        %v813 = vsel %vm309, %v798, 0
        %v816 = vsel %vm309, %v799, 0
        %v818 = vsel %vm322, %v804, 0
        %v820 = vsel %vm322, %v805, 0
        %822 = vmatpush.bf16.msra.mxu0 0
        %823 = vmatpush.bf16.msra.mxu0 0
        %824 = vmatpush.bf16.msra.mxu0 0
        %825 = vmatpush.bf16.msra.mxu0 0
        %826 = vmatpush.bf16.msra.mxu0 0
        %827 = vmatpush.bf16.msra.mxu0 0
        %828 = vmatpush.bf16.msra.mxu0 0
        %829 = vmatpush.bf16.msra.mxu0 %v818
        %830 = vmatmul.bf16.gmra.mxu0 %v807
        %v831 = vpop.f32.mrf.mxu0
        %v832 = vadd.f32 0.0, %v831
        %v833 = vpop.f32.mrf.mxu0
        %v834 = vadd.f32 0.0, %v833
        %835 = vmatmul.bf16.gmra.mxu0 %v810
        %v836 = vpop.f32.mrf.mxu0
        %v837 = vadd.f32 0.0, %v836
        %v838 = vpop.f32.mrf.mxu0
        %v839 = vadd.f32 0.0, %v838
        %840 = vmatmul.bf16.gmra.mxu0 %v813
        %v841 = vpop.f32.mrf.mxu0
        %v842 = vadd.f32 0.0, %v841
        %v843 = vpop.f32.mrf.mxu0
        %v844 = vadd.f32 0.0, %v843
        %845 = vmatmul.bf16.gmra.mxu0 %v816
        %v846 = vpop.f32.mrf.mxu0
        %v847 = vadd.f32 0.0, %v846
        %v848 = vpop.f32.mrf.mxu0
        %v849 = vadd.f32 0.0, %v848
        %850 = vdwg.mxu0
        %851 = vmatpush.bf16.msra.mxu0 0
        %852 = vmatpush.bf16.msra.mxu0 0
        %853 = vmatpush.bf16.msra.mxu0 0
        %854 = vmatpush.bf16.msra.mxu0 0
        %855 = vmatpush.bf16.msra.mxu0 0
        %856 = vmatpush.bf16.msra.mxu0 0
        %857 = vmatpush.bf16.msra.mxu0 0
        %858 = vmatpush.bf16.msra.mxu0 %v820
        %859 = vmatmul.bf16.gmra.mxu0 %v807
        %v860 = vpop.f32.mrf.mxu0
        %v861 = vadd.f32 0.0, %v860
        %v862 = vpop.f32.mrf.mxu0
        %v863 = vadd.f32 0.0, %v862
        %864 = vmatmul.bf16.gmra.mxu0 %v810
        %v865 = vpop.f32.mrf.mxu0
        %v866 = vadd.f32 0.0, %v865
        %v867 = vpop.f32.mrf.mxu0
        %v868 = vadd.f32 0.0, %v867
        %869 = vmatmul.bf16.gmra.mxu0 %v813
        %v870 = vpop.f32.mrf.mxu0
        %v871 = vadd.f32 0.0, %v870
        %v872 = vpop.f32.mrf.mxu0
        %v873 = vadd.f32 0.0, %v872
        %874 = vmatmul.bf16.gmra.mxu0 %v816
        %v875 = vpop.f32.mrf.mxu0
        %v876 = vadd.f32 0.0, %v875
        %v877 = vpop.f32.mrf.mxu0
        %v878 = vadd.f32 0.0, %v877
        %879 = vdwg.mxu0
        %v880 = vadd.f32 %v772, %v832
        %v881 = vadd.f32 %v773, %v861
        %v882 = vadd.f32 %v774, %v834
        %v883 = vadd.f32 %v775, %v863
        %v884 = vadd.f32 %v776, %v837
        %v885 = vadd.f32 %v777, %v866
        %v886 = vadd.f32 %v778, %v839
        %v887 = vadd.f32 %v779, %v868
        %v888 = vadd.f32 %v780, %v842
        %v889 = vadd.f32 %v781, %v871
        %v890 = vadd.f32 %v782, %v844
        %v891 = vadd.f32 %v783, %v873
        %v892 = vadd.f32 %v784, %v847
        %v893 = vadd.f32 %v785, %v876
        %v894 = vadd.f32 %v786, %v849
        %v895 = vadd.f32 %v787, %v878
        %s896 = scalar_lea.vmem %s276, 32
        %v897 = vld [vmem:[%s896] sm:$0xff]
        %v898 = vld [vmem:[%s896 + $0x10] sm:$0xff]
        %v899 = vld [vmem:[%s896 + $0x20] sm:$0xff]
        %v900 = vld [vmem:[%s896 + $0x30] sm:$0xff]
        %v901 = vld [vmem:[%s896 + $0x40] sm:$0xff]
        %v902 = vld [vmem:[%s896 + $0x50] sm:$0xff]
        %v903 = vld [vmem:[%s896 + $0x60] sm:$0xff]
        %v904 = vld [vmem:[%s896 + $0x70] sm:$0xff]
        %v905 = vpack.c.bf16 %v898, %v897
        %v906 = vpack.c.bf16 %v900, %v899
        %v907 = vpack.c.bf16 %v902, %v901
        %v908 = vpack.c.bf16 %v904, %v903
        %s909 = scalar_lea.vmem %s1, 24
        %v910 = vld [vmem:[%s909] sm:$0xf]
        %912 = vst [vmem:[#allocation1] ss:$4 sm:$0xff] %v910
        %v913 = vld.sshfl [vmem:[#allocation1] sm:$0xff pattern:$0x73625140]
        %v914 = vld.sshfl [vmem:[#allocation1 + $0x8] sm:$0xff pattern:$0x73625140]
        %v916 = vsel %vm309, %v905, 0
        %v919 = vsel %vm309, %v906, 0
        %v922 = vsel %vm309, %v907, 0
        %v925 = vsel %vm309, %v908, 0
        %v927 = vsel %vm322, %v913, 0
        %v929 = vsel %vm322, %v914, 0
        %931 = vmatpush.bf16.msra.mxu0 0
        %932 = vmatpush.bf16.msra.mxu0 0
        %933 = vmatpush.bf16.msra.mxu0 0
        %934 = vmatpush.bf16.msra.mxu0 0
        %935 = vmatpush.bf16.msra.mxu0 0
        %936 = vmatpush.bf16.msra.mxu0 0
        %937 = vmatpush.bf16.msra.mxu0 0
        %938 = vmatpush.bf16.msra.mxu0 %v927
        %939 = vmatmul.bf16.gmra.mxu0 %v916
        %v940 = vpop.f32.mrf.mxu0
        %v941 = vadd.f32 0.0, %v940
        %v942 = vpop.f32.mrf.mxu0
        %v943 = vadd.f32 0.0, %v942
        %944 = vmatmul.bf16.gmra.mxu0 %v919
        %v945 = vpop.f32.mrf.mxu0
        %v946 = vadd.f32 0.0, %v945
        %v947 = vpop.f32.mrf.mxu0
        %v948 = vadd.f32 0.0, %v947
        %949 = vmatmul.bf16.gmra.mxu0 %v922
        %v950 = vpop.f32.mrf.mxu0
        %v951 = vadd.f32 0.0, %v950
        %v952 = vpop.f32.mrf.mxu0
        %v953 = vadd.f32 0.0, %v952
        %954 = vmatmul.bf16.gmra.mxu0 %v925
        %v955 = vpop.f32.mrf.mxu0
        %v956 = vadd.f32 0.0, %v955
        %v957 = vpop.f32.mrf.mxu0
        %v958 = vadd.f32 0.0, %v957
        %959 = vdwg.mxu0
        %960 = vmatpush.bf16.msra.mxu0 0
        %961 = vmatpush.bf16.msra.mxu0 0
        %962 = vmatpush.bf16.msra.mxu0 0
        %963 = vmatpush.bf16.msra.mxu0 0
        %964 = vmatpush.bf16.msra.mxu0 0
        %965 = vmatpush.bf16.msra.mxu0 0
        %966 = vmatpush.bf16.msra.mxu0 0
        %967 = vmatpush.bf16.msra.mxu0 %v929
        %968 = vmatmul.bf16.gmra.mxu0 %v916
        %v969 = vpop.f32.mrf.mxu0
        %v970 = vadd.f32 0.0, %v969
        %v971 = vpop.f32.mrf.mxu0
        %v972 = vadd.f32 0.0, %v971
        %973 = vmatmul.bf16.gmra.mxu0 %v919
        %v974 = vpop.f32.mrf.mxu0
        %v975 = vadd.f32 0.0, %v974
        %v976 = vpop.f32.mrf.mxu0
        %v977 = vadd.f32 0.0, %v976
        %978 = vmatmul.bf16.gmra.mxu0 %v922
        %v979 = vpop.f32.mrf.mxu0
        %v980 = vadd.f32 0.0, %v979
        %v981 = vpop.f32.mrf.mxu0
        %v982 = vadd.f32 0.0, %v981
        %983 = vmatmul.bf16.gmra.mxu0 %v925
        %v984 = vpop.f32.mrf.mxu0
        %v985 = vadd.f32 0.0, %v984
        %v986 = vpop.f32.mrf.mxu0
        %v987 = vadd.f32 0.0, %v986
        %988 = vdwg.mxu0
        %v989 = vadd.f32 %v880, %v941
        %v990 = vadd.f32 %v881, %v970
        %v991 = vadd.f32 %v882, %v943
        %v992 = vadd.f32 %v883, %v972
        %v993 = vadd.f32 %v884, %v946
        %v994 = vadd.f32 %v885, %v975
        %v995 = vadd.f32 %v886, %v948
        %v996 = vadd.f32 %v887, %v977
        %v997 = vadd.f32 %v888, %v951
        %v998 = vadd.f32 %v889, %v980
        %v999 = vadd.f32 %v890, %v953
        %v1000 = vadd.f32 %v891, %v982
        %v1001 = vadd.f32 %v892, %v956
        %v1002 = vadd.f32 %v893, %v985
        %v1003 = vadd.f32 %v894, %v958
        %v1004 = vadd.f32 %v895, %v987
        %v1005 = vld [vmem:[%s896 + $0x1] sm:$0xff]
        %v1006 = vld [vmem:[%s896 + $0x11] sm:$0xff]
        %v1007 = vld [vmem:[%s896 + $0x21] sm:$0xff]
        %v1008 = vld [vmem:[%s896 + $0x31] sm:$0xff]
        %v1009 = vld [vmem:[%s896 + $0x41] sm:$0xff]
        %v1010 = vld [vmem:[%s896 + $0x51] sm:$0xff]
        %v1011 = vld [vmem:[%s896 + $0x61] sm:$0xff]
        %v1012 = vld [vmem:[%s896 + $0x71] sm:$0xff]
        %v1013 = vpack.c.bf16 %v1006, %v1005
        %v1014 = vpack.c.bf16 %v1008, %v1007
        %v1015 = vpack.c.bf16 %v1010, %v1009
        %v1016 = vpack.c.bf16 %v1012, %v1011
        %s1017 = scalar_lea.vmem %s1, 28
        %v1018 = vld [vmem:[%s1017] sm:$0xf]
        %1020 = vst [vmem:[#allocation1] ss:$4 sm:$0xff] %v1018
        %v1021 = vld.sshfl [vmem:[#allocation1] sm:$0xff pattern:$0x73625140]
        %v1022 = vld.sshfl [vmem:[#allocation1 + $0x8] sm:$0xff pattern:$0x73625140]
        %v1024 = vsel %vm309, %v1013, 0
        %v1027 = vsel %vm309, %v1014, 0
        %v1030 = vsel %vm309, %v1015, 0
        %v1033 = vsel %vm309, %v1016, 0
        %v1035 = vsel %vm322, %v1021, 0
        %v1037 = vsel %vm322, %v1022, 0
        %1039 = vmatpush.bf16.msra.mxu0 0
        %1040 = vmatpush.bf16.msra.mxu0 0
        %1041 = vmatpush.bf16.msra.mxu0 0
        %1042 = vmatpush.bf16.msra.mxu0 0
        %1043 = vmatpush.bf16.msra.mxu0 0
        %1044 = vmatpush.bf16.msra.mxu0 0
        %1045 = vmatpush.bf16.msra.mxu0 0
        %1046 = vmatpush.bf16.msra.mxu0 %v1035
        %1047 = vmatmul.bf16.gmra.mxu0 %v1024
        %v1048 = vpop.f32.mrf.mxu0
        %v1049 = vadd.f32 0.0, %v1048
        %v1050 = vpop.f32.mrf.mxu0
        %v1051 = vadd.f32 0.0, %v1050
        %1052 = vmatmul.bf16.gmra.mxu0 %v1027
        %v1053 = vpop.f32.mrf.mxu0
        %v1054 = vadd.f32 0.0, %v1053
        %v1055 = vpop.f32.mrf.mxu0
        %v1056 = vadd.f32 0.0, %v1055
        %1057 = vmatmul.bf16.gmra.mxu0 %v1030
        %v1058 = vpop.f32.mrf.mxu0
        %v1059 = vadd.f32 0.0, %v1058
        %v1060 = vpop.f32.mrf.mxu0
        %v1061 = vadd.f32 0.0, %v1060
        %1062 = vmatmul.bf16.gmra.mxu0 %v1033
        %v1063 = vpop.f32.mrf.mxu0
        %v1064 = vadd.f32 0.0, %v1063
        %v1065 = vpop.f32.mrf.mxu0
        %v1066 = vadd.f32 0.0, %v1065
        %1067 = vdwg.mxu0
        %1068 = vmatpush.bf16.msra.mxu0 0
        %1069 = vmatpush.bf16.msra.mxu0 0
        %1070 = vmatpush.bf16.msra.mxu0 0
        %1071 = vmatpush.bf16.msra.mxu0 0
        %1072 = vmatpush.bf16.msra.mxu0 0
        %1073 = vmatpush.bf16.msra.mxu0 0
        %1074 = vmatpush.bf16.msra.mxu0 0
        %1075 = vmatpush.bf16.msra.mxu0 %v1037
        %1076 = vmatmul.bf16.gmra.mxu0 %v1024
        %v1077 = vpop.f32.mrf.mxu0
        %v1078 = vadd.f32 0.0, %v1077
        %v1079 = vpop.f32.mrf.mxu0
        %v1080 = vadd.f32 0.0, %v1079
        %1081 = vmatmul.bf16.gmra.mxu0 %v1027
        %v1082 = vpop.f32.mrf.mxu0
        %v1083 = vadd.f32 0.0, %v1082
        %v1084 = vpop.f32.mrf.mxu0
        %v1085 = vadd.f32 0.0, %v1084
        %1086 = vmatmul.bf16.gmra.mxu0 %v1030
        %v1087 = vpop.f32.mrf.mxu0
        %v1088 = vadd.f32 0.0, %v1087
        %v1089 = vpop.f32.mrf.mxu0
        %v1090 = vadd.f32 0.0, %v1089
        %1091 = vmatmul.bf16.gmra.mxu0 %v1033
        %v1092 = vpop.f32.mrf.mxu0
        %v1093 = vadd.f32 0.0, %v1092
        %v1094 = vpop.f32.mrf.mxu0
        %v1095 = vadd.f32 0.0, %v1094
        %1096 = vdwg.mxu0
        %v1097 = vadd.f32 %v989, %v1049
        %v1098 = vadd.f32 %v990, %v1078
        %v1099 = vadd.f32 %v991, %v1051
        %v1100 = vadd.f32 %v992, %v1080
        %v1101 = vadd.f32 %v993, %v1054
        %v1102 = vadd.f32 %v994, %v1083
        %v1103 = vadd.f32 %v995, %v1056
        %v1104 = vadd.f32 %v996, %v1085
        %v1105 = vadd.f32 %v997, %v1059
        %v1106 = vadd.f32 %v998, %v1088
        %v1107 = vadd.f32 %v999, %v1061
        %v1108 = vadd.f32 %v1000, %v1090
        %v1109 = vadd.f32 %v1001, %v1064
        %v1110 = vadd.f32 %v1002, %v1093
        %v1111 = vadd.f32 %v1003, %v1066
        %v1112 = vadd.f32 %v1004, %v1095
        %v1113 = vld [vmem:[%s896 + $0x2] sm:$0xff]
        %v1114 = vld [vmem:[%s896 + $0x12] sm:$0xff]
        %v1115 = vld [vmem:[%s896 + $0x22] sm:$0xff]
        %v1116 = vld [vmem:[%s896 + $0x32] sm:$0xff]
        %v1117 = vld [vmem:[%s896 + $0x42] sm:$0xff]
        %v1118 = vld [vmem:[%s896 + $0x52] sm:$0xff]
        %v1119 = vld [vmem:[%s896 + $0x62] sm:$0xff]
        %v1120 = vld [vmem:[%s896 + $0x72] sm:$0xff]
        %v1121 = vpack.c.bf16 %v1114, %v1113
        %v1122 = vpack.c.bf16 %v1116, %v1115
        %v1123 = vpack.c.bf16 %v1118, %v1117
        %v1124 = vpack.c.bf16 %v1120, %v1119
        %s1125 = scalar_lea.vmem %s1, 32
        %v1126 = vld [vmem:[%s1125] sm:$0xf]
        %1128 = vst [vmem:[#allocation1] ss:$4 sm:$0xff] %v1126
        %v1129 = vld.sshfl [vmem:[#allocation1] sm:$0xff pattern:$0x73625140]
        %v1130 = vld.sshfl [vmem:[#allocation1 + $0x8] sm:$0xff pattern:$0x73625140]
        %v1132 = vsel %vm309, %v1121, 0
        %v1135 = vsel %vm309, %v1122, 0
        %v1138 = vsel %vm309, %v1123, 0
        %v1141 = vsel %vm309, %v1124, 0
        %v1143 = vsel %vm322, %v1129, 0
        %v1145 = vsel %vm322, %v1130, 0
        %1147 = vmatpush.bf16.msra.mxu0 0
        %1148 = vmatpush.bf16.msra.mxu0 0
        %1149 = vmatpush.bf16.msra.mxu0 0
        %1150 = vmatpush.bf16.msra.mxu0 0
        %1151 = vmatpush.bf16.msra.mxu0 0
        %1152 = vmatpush.bf16.msra.mxu0 0
        %1153 = vmatpush.bf16.msra.mxu0 0
        %1154 = vmatpush.bf16.msra.mxu0 %v1143
        %1155 = vmatmul.bf16.gmra.mxu0 %v1132
        %v1156 = vpop.f32.mrf.mxu0
        %v1157 = vadd.f32 0.0, %v1156
        %v1158 = vpop.f32.mrf.mxu0
        %v1159 = vadd.f32 0.0, %v1158
        %1160 = vmatmul.bf16.gmra.mxu0 %v1135
        %v1161 = vpop.f32.mrf.mxu0
        %v1162 = vadd.f32 0.0, %v1161
        %v1163 = vpop.f32.mrf.mxu0
        %v1164 = vadd.f32 0.0, %v1163
        %1165 = vmatmul.bf16.gmra.mxu0 %v1138
        %v1166 = vpop.f32.mrf.mxu0
        %v1167 = vadd.f32 0.0, %v1166
        %v1168 = vpop.f32.mrf.mxu0
        %v1169 = vadd.f32 0.0, %v1168
        %1170 = vmatmul.bf16.gmra.mxu0 %v1141
        %v1171 = vpop.f32.mrf.mxu0
        %v1172 = vadd.f32 0.0, %v1171
        %v1173 = vpop.f32.mrf.mxu0
        %v1174 = vadd.f32 0.0, %v1173
        %1175 = vdwg.mxu0
        %1176 = vmatpush.bf16.msra.mxu0 0
        %1177 = vmatpush.bf16.msra.mxu0 0
        %1178 = vmatpush.bf16.msra.mxu0 0
        %1179 = vmatpush.bf16.msra.mxu0 0
        %1180 = vmatpush.bf16.msra.mxu0 0
        %1181 = vmatpush.bf16.msra.mxu0 0
        %1182 = vmatpush.bf16.msra.mxu0 0
        %1183 = vmatpush.bf16.msra.mxu0 %v1145
        %1184 = vmatmul.bf16.gmra.mxu0 %v1132
        %v1185 = vpop.f32.mrf.mxu0
        %v1186 = vadd.f32 0.0, %v1185
        %v1187 = vpop.f32.mrf.mxu0
        %v1188 = vadd.f32 0.0, %v1187
        %1189 = vmatmul.bf16.gmra.mxu0 %v1135
        %v1190 = vpop.f32.mrf.mxu0
        %v1191 = vadd.f32 0.0, %v1190
        %v1192 = vpop.f32.mrf.mxu0
        %v1193 = vadd.f32 0.0, %v1192
        %1194 = vmatmul.bf16.gmra.mxu0 %v1138
        %v1195 = vpop.f32.mrf.mxu0
        %v1196 = vadd.f32 0.0, %v1195
        %v1197 = vpop.f32.mrf.mxu0
        %v1198 = vadd.f32 0.0, %v1197
        %1199 = vmatmul.bf16.gmra.mxu0 %v1141
        %v1200 = vpop.f32.mrf.mxu0
        %v1201 = vadd.f32 0.0, %v1200
        %v1202 = vpop.f32.mrf.mxu0
        %v1203 = vadd.f32 0.0, %v1202
        %1204 = vdwg.mxu0
        %v1205 = vadd.f32 %v1097, %v1157
        %v1206 = vadd.f32 %v1098, %v1186
        %v1207 = vadd.f32 %v1099, %v1159
        %v1208 = vadd.f32 %v1100, %v1188
        %v1209 = vadd.f32 %v1101, %v1162
        %v1210 = vadd.f32 %v1102, %v1191
        %v1211 = vadd.f32 %v1103, %v1164
        %v1212 = vadd.f32 %v1104, %v1193
        %v1213 = vadd.f32 %v1105, %v1167
        %v1214 = vadd.f32 %v1106, %v1196
        %v1215 = vadd.f32 %v1107, %v1169
        %v1216 = vadd.f32 %v1108, %v1198
        %v1217 = vadd.f32 %v1109, %v1172
        %v1218 = vadd.f32 %v1110, %v1201
        %v1219 = vadd.f32 %v1111, %v1174
        %v1220 = vadd.f32 %v1112, %v1203
        %v1221 = vld [vmem:[%s2] sm:$0x3]
        %v1223 = vperm.slane %v1221, 0
        %v1224 = vperm.slane %v1221, 1
        %v1227 = vadd.f32 %v1205, %v1223
        %v1228 = vadd.f32 %v1206, %v1224
        %v1229 = vadd.f32 %v1207, %v1223
        %v1230 = vadd.f32 %v1208, %v1224
        %v1231 = vadd.f32 %v1209, %v1223
        %v1232 = vadd.f32 %v1210, %v1224
        %v1233 = vadd.f32 %v1211, %v1223
        %v1234 = vadd.f32 %v1212, %v1224
        %v1235 = vadd.f32 %v1213, %v1223
        %v1236 = vadd.f32 %v1214, %v1224
        %v1237 = vadd.f32 %v1215, %v1223
        %v1238 = vadd.f32 %v1216, %v1224
        %v1239 = vadd.f32 %v1217, %v1223
        %v1240 = vadd.f32 %v1218, %v1224
        %v1241 = vadd.f32 %v1219, %v1223
        %v1242 = vadd.f32 %v1220, %v1224
        %v1243 = vmax.f32 %v1227, 0.0
        %v1244 = vmax.f32 %v1228, 0.0
        %v1245 = vmax.f32 %v1229, 0.0
        %v1246 = vmax.f32 %v1230, 0.0
        %v1247 = vmax.f32 %v1231, 0.0
        %v1248 = vmax.f32 %v1232, 0.0
        %v1249 = vmax.f32 %v1233, 0.0
        %v1250 = vmax.f32 %v1234, 0.0
        %v1251 = vmax.f32 %v1235, 0.0
        %v1252 = vmax.f32 %v1236, 0.0
        %v1253 = vmax.f32 %v1237, 0.0
        %v1254 = vmax.f32 %v1238, 0.0
        %v1255 = vmax.f32 %v1239, 0.0
        %v1256 = vmax.f32 %v1240, 0.0
        %v1257 = vmax.f32 %v1241, 0.0
        %v1258 = vmax.f32 %v1242, 0.0
        %v1259 = vpack.c.bf16 %v1245, %v1243
        %v1260 = vpack.c.bf16 %v1246, %v1244
        %v1261 = vpack.c.bf16 %v1249, %v1247
        %v1262 = vpack.c.bf16 %v1250, %v1248
        %v1263 = vpack.c.bf16 %v1253, %v1251
        %v1264 = vpack.c.bf16 %v1254, %v1252
        %v1265 = vpack.c.bf16 %v1257, %v1255
        %v1266 = vpack.c.bf16 %v1258, %v1256
        %v1267 = vld [vmem:[%s3] sm:$0xff]
        %v1268 = vld [vmem:[%s4] sm:$0xff]
        %1270 = vset.pattern.permute.xlu0 0
        %1271 = vperm.xlu0 %1270, %v1268
        %v1272 = vpop.permute.xlu0 %1271
        %v1275 = vunpack.c.l.b16 %v1267
        %v1276 = vunpack.c.h.b16 %v1267
        %v1277 = vpack.c.b16 %v1275, %v1275
        %v1278 = vpack.c.b16 %v1276, %v1276
        %1281 = vmatpush.bf16.xpose.msra.mxu0 0
        %1282 = vmatpush.bf16.xpose.msra.mxu0 0
        %1283 = vmatpush.bf16.xpose.msra.mxu0 0
        %1284 = vmatpush.bf16.xpose.msra.mxu0 0
        %1285 = vmatpush.bf16.xpose.msra.mxu0 %v1265
        %1286 = vmatpush.bf16.xpose.msra.mxu0 %v1263
        %1287 = vmatpush.bf16.xpose.msra.mxu0 %v1261
        %1288 = vmatpush.bf16.xpose.msra.mxu0 %v1259
        %1289 = vmatmul.bf16.gmra.mxu0 %v1277
        %v1290 = vpop.f32.mrf.mxu0
        %v1291 = vadd.f32 %v1272, %v1290
        %v1292 = vpop.f32.mrf.mxu0
        %1293 = vdwg.mxu0
        %1294 = vmatpush.bf16.xpose.msra.mxu0 0
        %1295 = vmatpush.bf16.xpose.msra.mxu0 0
        %1296 = vmatpush.bf16.xpose.msra.mxu0 0
        %1297 = vmatpush.bf16.xpose.msra.mxu0 0
        %1298 = vmatpush.bf16.xpose.msra.mxu0 %v1266
        %1299 = vmatpush.bf16.xpose.msra.mxu0 %v1264
        %1300 = vmatpush.bf16.xpose.msra.mxu0 %v1262
        %1301 = vmatpush.bf16.xpose.msra.mxu0 %v1260
        %1302 = vmatmul.bf16.gmra.mxu0 %v1278
        %v1303 = vpop.f32.mrf.mxu0
        %v1304 = vadd.f32 %v1291, %v1303
        %v1305 = vpop.f32.mrf.mxu0
        %1306 = vdwg.mxu0
        %v1307 = vld [vmem:[%s6] sm:$0xff]
        %vm1308 = vcmask 64512
        %v1310 = vsel %vm1308, %v1304, 0
        %1312 = vmatpush.msra.mxu0 0.0
        %1313 = vmatpush.msra.mxu0 0.0
        %1314 = vmatpush.msra.mxu0 0.0
        %1315 = vmatpush.msra.mxu0 0.0
        %1316 = vmatpush.msra.mxu0 0.0
        %1317 = vmatpush.msra.mxu0 0.0
        %1318 = vmatpush.msra.mxu0 0.0
        %1319 = vmatpush.msra.mxu0 0.0
        %1320 = vmatpush.msra.mxu0 0.0
        %1321 = vmatpush.msra.mxu0 0.0
        %1322 = vmatpush.msra.mxu0 0.0
        %1323 = vmatpush.msra.mxu0 0.0
        %1324 = vmatpush.msra.mxu0 0.0
        %1325 = vmatpush.msra.mxu0 0.0
        %1326 = vmatpush.msra.mxu0 0.0
        %1327 = vmatpush.msra.mxu0 %v1307
        %1328 = vmatmul.f32.gmra.mxu0 %v1310
        %v1329 = vpop.f32.mrf.mxu0
        %v1330 = vadd.f32 0.0, %v1329
        %1331 = vdwg.mxu0
        %vm1332 = vcmask 130048
        %1333 = vst.msk [vmem:[#allocation2] sm:$0xff] %vm1332, %v1330
        %1334 = vrot.lane.b32.xlu0 %v1304, 120
        %v1335 = vpop.permute.xlu0 %1334
        %v1336 = vsel %vm1308, %v1335, 0
        %1338 = vmatpush.msra.mxu0 0.0
        %1339 = vmatpush.msra.mxu0 0.0
        %1340 = vmatpush.msra.mxu0 0.0
        %1341 = vmatpush.msra.mxu0 0.0
        %1342 = vmatpush.msra.mxu0 0.0
        %1343 = vmatpush.msra.mxu0 0.0
        %1344 = vmatpush.msra.mxu0 0.0
        %1345 = vmatpush.msra.mxu0 0.0
        %1346 = vmatpush.msra.mxu0 0.0
        %1347 = vmatpush.msra.mxu0 0.0
        %1348 = vmatpush.msra.mxu0 0.0
        %1349 = vmatpush.msra.mxu0 0.0
        %1350 = vmatpush.msra.mxu0 0.0
        %1351 = vmatpush.msra.mxu0 0.0
        %1352 = vmatpush.msra.mxu0 0.0
        %1353 = vmatpush.msra.mxu0 %v1307
        %1354 = vmatmul.f32.gmra.mxu0 %v1336
        %v1355 = vpop.f32.mrf.mxu0
        %v1356 = vadd.f32 0.0, %v1355
        %1357 = vdwg.mxu0
        %1358 = vst.msk [vmem:[#allocation2 + $0x8] sm:$0xff] %vm1332, %v1356
        %1359 = vrot.lane.b32.xlu0 %v1304, 112
        %v1360 = vpop.permute.xlu0 %1359
        %v1361 = vsel %vm1308, %v1360, 0
        %1363 = vmatpush.msra.mxu0 0.0
        %1364 = vmatpush.msra.mxu0 0.0
        %1365 = vmatpush.msra.mxu0 0.0
        %1366 = vmatpush.msra.mxu0 0.0
        %1367 = vmatpush.msra.mxu0 0.0
        %1368 = vmatpush.msra.mxu0 0.0
        %1369 = vmatpush.msra.mxu0 0.0
        %1370 = vmatpush.msra.mxu0 0.0
        %1371 = vmatpush.msra.mxu0 0.0
        %1372 = vmatpush.msra.mxu0 0.0
        %1373 = vmatpush.msra.mxu0 0.0
        %1374 = vmatpush.msra.mxu0 0.0
        %1375 = vmatpush.msra.mxu0 0.0
        %1376 = vmatpush.msra.mxu0 0.0
        %1377 = vmatpush.msra.mxu0 0.0
        %1378 = vmatpush.msra.mxu0 %v1307
        %1379 = vmatmul.f32.gmra.mxu0 %v1361
        %v1380 = vpop.f32.mrf.mxu0
        %v1381 = vadd.f32 0.0, %v1380
        %1382 = vdwg.mxu0
        %1383 = vst.msk [vmem:[#allocation2 + $0x10] sm:$0xff] %vm1332, %v1381
        %1384 = vrot.lane.b32.xlu0 %v1304, 104
        %v1385 = vpop.permute.xlu0 %1384
        %v1386 = vsel %vm1308, %v1385, 0
        %1388 = vmatpush.msra.mxu0 0.0
        %1389 = vmatpush.msra.mxu0 0.0
        %1390 = vmatpush.msra.mxu0 0.0
        %1391 = vmatpush.msra.mxu0 0.0
        %1392 = vmatpush.msra.mxu0 0.0
        %1393 = vmatpush.msra.mxu0 0.0
        %1394 = vmatpush.msra.mxu0 0.0
        %1395 = vmatpush.msra.mxu0 0.0
        %1396 = vmatpush.msra.mxu0 0.0
        %1397 = vmatpush.msra.mxu0 0.0
        %1398 = vmatpush.msra.mxu0 0.0
        %1399 = vmatpush.msra.mxu0 0.0
        %1400 = vmatpush.msra.mxu0 0.0
        %1401 = vmatpush.msra.mxu0 0.0
        %1402 = vmatpush.msra.mxu0 0.0
        %1403 = vmatpush.msra.mxu0 %v1307
        %1404 = vmatmul.f32.gmra.mxu0 %v1386
        %v1405 = vpop.f32.mrf.mxu0
        %v1406 = vadd.f32 0.0, %v1405
        %1407 = vdwg.mxu0
        %1408 = vst.msk [vmem:[#allocation2 + $0x18] sm:$0xff] %vm1332, %v1406
        %1409 = vrot.lane.b32.xlu0 %v1304, 96
        %v1410 = vpop.permute.xlu0 %1409
        %v1411 = vsel %vm1308, %v1410, 0
        %1413 = vmatpush.msra.mxu0 0.0
        %1414 = vmatpush.msra.mxu0 0.0
        %1415 = vmatpush.msra.mxu0 0.0
        %1416 = vmatpush.msra.mxu0 0.0
        %1417 = vmatpush.msra.mxu0 0.0
        %1418 = vmatpush.msra.mxu0 0.0
        %1419 = vmatpush.msra.mxu0 0.0
        %1420 = vmatpush.msra.mxu0 0.0
        %1421 = vmatpush.msra.mxu0 0.0
        %1422 = vmatpush.msra.mxu0 0.0
        %1423 = vmatpush.msra.mxu0 0.0
        %1424 = vmatpush.msra.mxu0 0.0
        %1425 = vmatpush.msra.mxu0 0.0
        %1426 = vmatpush.msra.mxu0 0.0
        %1427 = vmatpush.msra.mxu0 0.0
        %1428 = vmatpush.msra.mxu0 %v1307
        %1429 = vmatmul.f32.gmra.mxu0 %v1411
        %v1430 = vpop.f32.mrf.mxu0
        %v1431 = vadd.f32 0.0, %v1430
        %1432 = vdwg.mxu0
        %1433 = vst.msk [vmem:[#allocation2 + $0x20] sm:$0xff] %vm1332, %v1431
        %1434 = vrot.lane.b32.xlu0 %v1304, 88
        %v1435 = vpop.permute.xlu0 %1434
        %v1436 = vsel %vm1308, %v1435, 0
        %1438 = vmatpush.msra.mxu0 0.0
        %1439 = vmatpush.msra.mxu0 0.0
        %1440 = vmatpush.msra.mxu0 0.0
        %1441 = vmatpush.msra.mxu0 0.0
        %1442 = vmatpush.msra.mxu0 0.0
        %1443 = vmatpush.msra.mxu0 0.0
        %1444 = vmatpush.msra.mxu0 0.0
        %1445 = vmatpush.msra.mxu0 0.0
        %1446 = vmatpush.msra.mxu0 0.0
        %1447 = vmatpush.msra.mxu0 0.0
        %1448 = vmatpush.msra.mxu0 0.0
        %1449 = vmatpush.msra.mxu0 0.0
        %1450 = vmatpush.msra.mxu0 0.0
        %1451 = vmatpush.msra.mxu0 0.0
        %1452 = vmatpush.msra.mxu0 0.0
        %1453 = vmatpush.msra.mxu0 %v1307
        %1454 = vmatmul.f32.gmra.mxu0 %v1436
        %v1455 = vpop.f32.mrf.mxu0
        %v1456 = vadd.f32 0.0, %v1455
        %1457 = vdwg.mxu0
        %1458 = vst.msk [vmem:[#allocation2 + $0x28] sm:$0xff] %vm1332, %v1456
        %1459 = vrot.lane.b32.xlu0 %v1304, 80
        %v1460 = vpop.permute.xlu0 %1459
        %v1461 = vsel %vm1308, %v1460, 0
        %1463 = vmatpush.msra.mxu0 0.0
        %1464 = vmatpush.msra.mxu0 0.0
        %1465 = vmatpush.msra.mxu0 0.0
        %1466 = vmatpush.msra.mxu0 0.0
        %1467 = vmatpush.msra.mxu0 0.0
        %1468 = vmatpush.msra.mxu0 0.0
        %1469 = vmatpush.msra.mxu0 0.0
        %1470 = vmatpush.msra.mxu0 0.0
        %1471 = vmatpush.msra.mxu0 0.0
        %1472 = vmatpush.msra.mxu0 0.0
        %1473 = vmatpush.msra.mxu0 0.0
        %1474 = vmatpush.msra.mxu0 0.0
        %1475 = vmatpush.msra.mxu0 0.0
        %1476 = vmatpush.msra.mxu0 0.0
        %1477 = vmatpush.msra.mxu0 0.0
        %1478 = vmatpush.msra.mxu0 %v1307
        %1479 = vmatmul.f32.gmra.mxu0 %v1461
        %v1480 = vpop.f32.mrf.mxu0
        %v1481 = vadd.f32 0.0, %v1480
        %1482 = vdwg.mxu0
        %1483 = vst.msk [vmem:[#allocation2 + $0x30] sm:$0xff] %vm1332, %v1481
        %1484 = vrot.lane.b32.xlu0 %v1304, 72
        %v1485 = vpop.permute.xlu0 %1484
        %v1486 = vsel %vm1308, %v1485, 0
        %1488 = vmatpush.msra.mxu0 0.0
        %1489 = vmatpush.msra.mxu0 0.0
        %1490 = vmatpush.msra.mxu0 0.0
        %1491 = vmatpush.msra.mxu0 0.0
        %1492 = vmatpush.msra.mxu0 0.0
        %1493 = vmatpush.msra.mxu0 0.0
        %1494 = vmatpush.msra.mxu0 0.0
        %1495 = vmatpush.msra.mxu0 0.0
        %1496 = vmatpush.msra.mxu0 0.0
        %1497 = vmatpush.msra.mxu0 0.0
        %1498 = vmatpush.msra.mxu0 0.0
        %1499 = vmatpush.msra.mxu0 0.0
        %1500 = vmatpush.msra.mxu0 0.0
        %1501 = vmatpush.msra.mxu0 0.0
        %1502 = vmatpush.msra.mxu0 0.0
        %1503 = vmatpush.msra.mxu0 %v1307
        %1504 = vmatmul.f32.gmra.mxu0 %v1486
        %v1505 = vpop.f32.mrf.mxu0
        %v1506 = vadd.f32 0.0, %v1505
        %1507 = vdwg.mxu0
        %1508 = vst.msk [vmem:[#allocation2 + $0x38] sm:$0xff] %vm1332, %v1506
        %v1509 = vld [vmem:[%s5] sm:$0xff]
        %v1510 = vld [vmem:[%s5 + $0x8] sm:$0xff]
        %v1511 = vld [vmem:[#allocation2] ss:$8 sm:$0xf]
        %v1512 = vld [vmem:[#allocation2] ss:$8 sm:$0xf0]
        %v1513 = vor.u32 %v1511, %v1512
        %v1515 = vsel %vm1308, %v1509, 0
        %v1518 = vsel %vm1308, %v1510, 0
        %1520 = vmatpush.msra.mxu0 0.0
        %1521 = vmatpush.msra.mxu0 0.0
        %1522 = vmatpush.msra.mxu0 0.0
        %1523 = vmatpush.msra.mxu0 0.0
        %1524 = vmatpush.msra.mxu0 0.0
        %1525 = vmatpush.msra.mxu0 0.0
        %1526 = vmatpush.msra.mxu0 0.0
        %1527 = vmatpush.msra.mxu0 0.0
        %1528 = vmatpush.msra.mxu0 0.0
        %1529 = vmatpush.msra.mxu0 0.0
        %1530 = vmatpush.msra.mxu0 0.0
        %1531 = vmatpush.msra.mxu0 0.0
        %1532 = vmatpush.msra.mxu0 0.0
        %1533 = vmatpush.msra.mxu0 0.0
        %1534 = vmatpush.msra.mxu0 0.0
        %1535 = vmatpush.msra.mxu0 %v1513
        %1536 = vmatmul.f32.gmra.mxu0 %v1515
        %v1537 = vpop.f32.mrf.mxu0
        %v1538 = vadd.f32 0.0, %v1537
        %1539 = vmatmul.f32.gmra.mxu0 %v1518
        %v1540 = vpop.f32.mrf.mxu0
        %v1541 = vadd.f32 0.0, %v1540
        %1542 = vdwg.mxu0
        %1543 = vst.msk [vmem:[%s271] sm:$0xff] %vm1332, %v1538
        %1544 = vst.msk [vmem:[%s271 + $0x8] sm:$0xff] %vm1332, %v1541
        %s1545 = scalar_lea.vmem [#allocation2], 1
        %v1546 = vld [vmem:[%s1545] ss:$8 sm:$0xf]
        %v1547 = vld [vmem:[%s1545] ss:$8 sm:$0xf0]
        %v1548 = vor.u32 %v1546, %v1547
        %1549 = vmatpush.msra.mxu0 0.0
        %1550 = vmatpush.msra.mxu0 0.0
        %1551 = vmatpush.msra.mxu0 0.0
        %1552 = vmatpush.msra.mxu0 0.0
        %1553 = vmatpush.msra.mxu0 0.0
        %1554 = vmatpush.msra.mxu0 0.0
        %1555 = vmatpush.msra.mxu0 0.0
        %1556 = vmatpush.msra.mxu0 0.0
        %1557 = vmatpush.msra.mxu0 0.0
        %1558 = vmatpush.msra.mxu0 0.0
        %1559 = vmatpush.msra.mxu0 0.0
        %1560 = vmatpush.msra.mxu0 0.0
        %1561 = vmatpush.msra.mxu0 0.0
        %1562 = vmatpush.msra.mxu0 0.0
        %1563 = vmatpush.msra.mxu0 0.0
        %1564 = vmatpush.msra.mxu0 %v1548
        %1565 = vmatmul.f32.gmra.mxu0 %v1515
        %v1566 = vpop.f32.mrf.mxu0
        %v1567 = vadd.f32 0.0, %v1566
        %1568 = vmatmul.f32.gmra.mxu0 %v1518
        %v1569 = vpop.f32.mrf.mxu0
        %v1570 = vadd.f32 0.0, %v1569
        %1571 = vdwg.mxu0
        %s1572 = scalar_lea.vmem %s271, 16 [#allocation3]
        %1573 = vst.msk [vmem:[%s1572] sm:$0xff] %vm1332, %v1567
        %1574 = vst.msk [vmem:[%s1572 + $0x8] sm:$0xff] %vm1332, %v1570
        %s1575 = scalar_lea.vmem [#allocation2], 2
        %v1576 = vld [vmem:[%s1575] ss:$8 sm:$0xf]
        %v1577 = vld [vmem:[%s1575] ss:$8 sm:$0xf0]
        %v1578 = vor.u32 %v1576, %v1577
        %1579 = vmatpush.msra.mxu0 0.0
        %1580 = vmatpush.msra.mxu0 0.0
        %1581 = vmatpush.msra.mxu0 0.0
        %1582 = vmatpush.msra.mxu0 0.0
        %1583 = vmatpush.msra.mxu0 0.0
        %1584 = vmatpush.msra.mxu0 0.0
        %1585 = vmatpush.msra.mxu0 0.0
        %1586 = vmatpush.msra.mxu0 0.0
        %1587 = vmatpush.msra.mxu0 0.0
        %1588 = vmatpush.msra.mxu0 0.0
        %1589 = vmatpush.msra.mxu0 0.0
        %1590 = vmatpush.msra.mxu0 0.0
        %1591 = vmatpush.msra.mxu0 0.0
        %1592 = vmatpush.msra.mxu0 0.0
        %1593 = vmatpush.msra.mxu0 0.0
        %1594 = vmatpush.msra.mxu0 %v1578
        %1595 = vmatmul.f32.gmra.mxu0 %v1515
        %v1596 = vpop.f32.mrf.mxu0
        %v1597 = vadd.f32 0.0, %v1596
        %1598 = vmatmul.f32.gmra.mxu0 %v1518
        %v1599 = vpop.f32.mrf.mxu0
        %v1600 = vadd.f32 0.0, %v1599
        %1601 = vdwg.mxu0
        %s1602 = scalar_lea.vmem %s271, 32 [#allocation3]
        %1603 = vst.msk [vmem:[%s1602] sm:$0xff] %vm1332, %v1597
        %1604 = vst.msk [vmem:[%s1602 + $0x8] sm:$0xff] %vm1332, %v1600
        %s1605 = scalar_lea.vmem [#allocation2], 3
        %v1606 = vld [vmem:[%s1605] ss:$8 sm:$0xf]
        %v1607 = vld [vmem:[%s1605] ss:$8 sm:$0xf0]
        %v1608 = vor.u32 %v1606, %v1607
        %1609 = vmatpush.msra.mxu0 0.0
        %1610 = vmatpush.msra.mxu0 0.0
        %1611 = vmatpush.msra.mxu0 0.0
        %1612 = vmatpush.msra.mxu0 0.0
        %1613 = vmatpush.msra.mxu0 0.0
        %1614 = vmatpush.msra.mxu0 0.0
        %1615 = vmatpush.msra.mxu0 0.0
        %1616 = vmatpush.msra.mxu0 0.0
        %1617 = vmatpush.msra.mxu0 0.0
        %1618 = vmatpush.msra.mxu0 0.0
        %1619 = vmatpush.msra.mxu0 0.0
        %1620 = vmatpush.msra.mxu0 0.0
        %1621 = vmatpush.msra.mxu0 0.0
        %1622 = vmatpush.msra.mxu0 0.0
        %1623 = vmatpush.msra.mxu0 0.0
        %1624 = vmatpush.msra.mxu0 %v1608
        %1625 = vmatmul.f32.gmra.mxu0 %v1515
        %v1626 = vpop.f32.mrf.mxu0
        %v1627 = vadd.f32 0.0, %v1626
        %1628 = vmatmul.f32.gmra.mxu0 %v1518
        %v1629 = vpop.f32.mrf.mxu0
        %v1630 = vadd.f32 0.0, %v1629
        %1631 = vdwg.mxu0
        %s1632 = scalar_lea.vmem %s271, 48 [#allocation3]
        %1633 = vst.msk [vmem:[%s1632] sm:$0xff] %vm1332, %v1627
        %1634 = vst.msk [vmem:[%s1632 + $0x8] sm:$0xff] %vm1332, %v1630
        %s1635 = scalar_lea.vmem [#allocation2], 4
        %v1636 = vld [vmem:[%s1635] ss:$8 sm:$0xf]
        %v1637 = vld [vmem:[%s1635] ss:$8 sm:$0xf0]
        %v1638 = vor.u32 %v1636, %v1637
        %1639 = vmatpush.msra.mxu0 0.0
        %1640 = vmatpush.msra.mxu0 0.0
        %1641 = vmatpush.msra.mxu0 0.0
        %1642 = vmatpush.msra.mxu0 0.0
        %1643 = vmatpush.msra.mxu0 0.0
        %1644 = vmatpush.msra.mxu0 0.0
        %1645 = vmatpush.msra.mxu0 0.0
        %1646 = vmatpush.msra.mxu0 0.0
        %1647 = vmatpush.msra.mxu0 0.0
        %1648 = vmatpush.msra.mxu0 0.0
        %1649 = vmatpush.msra.mxu0 0.0
        %1650 = vmatpush.msra.mxu0 0.0
        %1651 = vmatpush.msra.mxu0 0.0
        %1652 = vmatpush.msra.mxu0 0.0
        %1653 = vmatpush.msra.mxu0 0.0
        %1654 = vmatpush.msra.mxu0 %v1638
        %1655 = vmatmul.f32.gmra.mxu0 %v1515
        %v1656 = vpop.f32.mrf.mxu0
        %v1657 = vadd.f32 0.0, %v1656
        %1658 = vmatmul.f32.gmra.mxu0 %v1518
        %v1659 = vpop.f32.mrf.mxu0
        %v1660 = vadd.f32 0.0, %v1659
        %1661 = vdwg.mxu0
        %s1662 = scalar_lea.vmem %s271, 64 [#allocation3]
        %1663 = vst.msk [vmem:[%s1662] sm:$0xff] %vm1332, %v1657
        %1664 = vst.msk [vmem:[%s1662 + $0x8] sm:$0xff] %vm1332, %v1660
        %s1665 = scalar_lea.vmem [#allocation2], 5
        %v1666 = vld [vmem:[%s1665] ss:$8 sm:$0xf]
        %v1667 = vld [vmem:[%s1665] ss:$8 sm:$0xf0]
        %v1668 = vor.u32 %v1666, %v1667
        %1669 = vmatpush.msra.mxu0 0.0
        %1670 = vmatpush.msra.mxu0 0.0
        %1671 = vmatpush.msra.mxu0 0.0
        %1672 = vmatpush.msra.mxu0 0.0
        %1673 = vmatpush.msra.mxu0 0.0
        %1674 = vmatpush.msra.mxu0 0.0
        %1675 = vmatpush.msra.mxu0 0.0
        %1676 = vmatpush.msra.mxu0 0.0
        %1677 = vmatpush.msra.mxu0 0.0
        %1678 = vmatpush.msra.mxu0 0.0
        %1679 = vmatpush.msra.mxu0 0.0
        %1680 = vmatpush.msra.mxu0 0.0
        %1681 = vmatpush.msra.mxu0 0.0
        %1682 = vmatpush.msra.mxu0 0.0
        %1683 = vmatpush.msra.mxu0 0.0
        %1684 = vmatpush.msra.mxu0 %v1668
        %1685 = vmatmul.f32.gmra.mxu0 %v1515
        %v1686 = vpop.f32.mrf.mxu0
        %v1687 = vadd.f32 0.0, %v1686
        %1688 = vmatmul.f32.gmra.mxu0 %v1518
        %v1689 = vpop.f32.mrf.mxu0
        %v1690 = vadd.f32 0.0, %v1689
        %1691 = vdwg.mxu0
        %s1692 = scalar_lea.vmem %s271, 80 [#allocation3]
        %1693 = vst.msk [vmem:[%s1692] sm:$0xff] %vm1332, %v1687
        %1694 = vst.msk [vmem:[%s1692 + $0x8] sm:$0xff] %vm1332, %v1690
        %s1695 = scalar_lea.vmem [#allocation2], 6
        %v1696 = vld [vmem:[%s1695] ss:$8 sm:$0xf]
        %v1697 = vld [vmem:[%s1695] ss:$8 sm:$0xf0]
        %v1698 = vor.u32 %v1696, %v1697
        %1699 = vmatpush.msra.mxu0 0.0
        %1700 = vmatpush.msra.mxu0 0.0
        %1701 = vmatpush.msra.mxu0 0.0
        %1702 = vmatpush.msra.mxu0 0.0
        %1703 = vmatpush.msra.mxu0 0.0
        %1704 = vmatpush.msra.mxu0 0.0
        %1705 = vmatpush.msra.mxu0 0.0
        %1706 = vmatpush.msra.mxu0 0.0
        %1707 = vmatpush.msra.mxu0 0.0
        %1708 = vmatpush.msra.mxu0 0.0
        %1709 = vmatpush.msra.mxu0 0.0
        %1710 = vmatpush.msra.mxu0 0.0
        %1711 = vmatpush.msra.mxu0 0.0
        %1712 = vmatpush.msra.mxu0 0.0
        %1713 = vmatpush.msra.mxu0 0.0
        %1714 = vmatpush.msra.mxu0 %v1698
        %1715 = vmatmul.f32.gmra.mxu0 %v1515
        %v1716 = vpop.f32.mrf.mxu0
        %v1717 = vadd.f32 0.0, %v1716
        %1718 = vmatmul.f32.gmra.mxu0 %v1518
        %v1719 = vpop.f32.mrf.mxu0
        %v1720 = vadd.f32 0.0, %v1719
        %1721 = vdwg.mxu0
        %s1722 = scalar_lea.vmem %s271, 96 [#allocation3]
        %1723 = vst.msk [vmem:[%s1722] sm:$0xff] %vm1332, %v1717
        %1724 = vst.msk [vmem:[%s1722 + $0x8] sm:$0xff] %vm1332, %v1720
        %s1725 = scalar_lea.vmem [#allocation2], 7
        %v1726 = vld [vmem:[%s1725] ss:$8 sm:$0xf]
        %v1727 = vld [vmem:[%s1725] ss:$8 sm:$0xf0]
        %v1728 = vor.u32 %v1726, %v1727
        %1729 = vmatpush.msra.mxu0 0.0
        %1730 = vmatpush.msra.mxu0 0.0
        %1731 = vmatpush.msra.mxu0 0.0
        %1732 = vmatpush.msra.mxu0 0.0
        %1733 = vmatpush.msra.mxu0 0.0
        %1734 = vmatpush.msra.mxu0 0.0
        %1735 = vmatpush.msra.mxu0 0.0
        %1736 = vmatpush.msra.mxu0 0.0
        %1737 = vmatpush.msra.mxu0 0.0
        %1738 = vmatpush.msra.mxu0 0.0
        %1739 = vmatpush.msra.mxu0 0.0
        %1740 = vmatpush.msra.mxu0 0.0
        %1741 = vmatpush.msra.mxu0 0.0
        %1742 = vmatpush.msra.mxu0 0.0
        %1743 = vmatpush.msra.mxu0 0.0
        %1744 = vmatpush.msra.mxu0 %v1728
        %1745 = vmatmul.f32.gmra.mxu0 %v1515
        %v1746 = vpop.f32.mrf.mxu0
        %v1747 = vadd.f32 0.0, %v1746
        %1748 = vmatmul.f32.gmra.mxu0 %v1518
        %v1749 = vpop.f32.mrf.mxu0
        %v1750 = vadd.f32 0.0, %v1749
        %1751 = vdwg.mxu0
        %s1752 = scalar_lea.vmem %s271, 112 [#allocation3]
        %1753 = vst.msk [vmem:[%s1752] sm:$0xff] %vm1332, %v1747
        %1754 = vst.msk [vmem:[%s1752 + $0x8] sm:$0xff] %vm1332, %v1750
        %s1755 = sand.u32 %s181, 1
        %s1756 = scalar_lea.sflag [#allocation4], %s1755
        %s1757 = sand.u32 %s181, 1
        %s1758 = smul.addr %s1757, 128
        %s1759 = scalar_lea.vmem [#allocation3], %s1758
        // Predicated region
        $region49: #{tpu_custom_call.1} parent=47 // pred_check
          %p1760 = pneg %p191
        $region50: #{tpu_custom_call.1} parent=47 // pred_check_branch
          %1762 = sbr.rel (%p1760) target = $region52
        $region51: #{tpu_custom_call.1} parent=47 // pred_region
          %1764 = vsyncadd %s1756, 0
          %s1765 = smul.addr %s21, 16
          %s1766 = smul.addr %s1765, 8
          %s1767 = scalar_lea.hbm %s7, %s1766
          %s1768 = sshll.u32 %s1759, 4
          %s1769 = int_to_ptr.vmem [resolvable:$true] %s1768
          %s1770 = sshll.u32 %s1767, 4
          %s1771 = int_to_ptr.hbm [resolvable:$true] %s1770
          %1776 = dma.vmem_to_hbm [thread:$0]  %s1769, 2048, %s1771, %s1756, 128, 128, 8
        $region52: #{tpu_custom_call.1} parent=47 // pred_fallthru
          _
      $region48: #{tpu_custom_call.1} parent=5 // pred_fallthru
        _
      %p1777 = scmp.le.s32.totalorder 2, %s16
      // Predicated region
      $region53: #{tpu_custom_call.1} parent=5 // pred_check
        %p1778 = pneg %p1777
      $region54: #{tpu_custom_call.1} parent=5 // pred_check_branch
        %1780 = sbr.rel (%p1778) target = $region56
      $region55: #{tpu_custom_call.1} parent=5 // pred_region
        %s1781 = ssub.s32 %s16, 2
        // Predicated region
        $region57: #{tpu_custom_call.1} parent=55 // pred_check
          %p1782 = pneg %p197
        $region58: #{tpu_custom_call.1} parent=55 // pred_check_branch
          %1784 = sbr.rel (%p1782) target = $region60
        $region59: #{tpu_custom_call.1} parent=55 // pred_region
          %s1785 = sand.u32 %s182, 1
          %s1786 = scalar_lea.sflag [#allocation4], %s1785
          %s1787 = sand.u32 %s182, 1
          %s1788 = smul.addr %s1787, 128
          %s1789 = scalar_lea.vmem [#allocation3], %s1788
          %1791 = dma.done %s1786, 2048
        $region60: #{tpu_custom_call.1} parent=55 // pred_fallthru
          _
      $region56: #{tpu_custom_call.1} parent=5 // pred_fallthru
        _
    $region6: #{tpu_custom_call.1} parent=1 // loop_footer
      %s20 = sadd.s32 1, %s16
    $region7: #{tpu_custom_call.1} parent=1 // loop_footer_branch
      %15 = sbr.rel target = $region3
    $region8: #{tpu_custom_call.1} parent=1 // loop_exit
      _
    %1792 = vsyncpa [#allocation4], 1
    %s1793 = scalar_lea.sflag [#allocation4], 1
    %1794 = vsyncpa %s1793, 1

</llo_original>
